<compile_context>
chip_gen: v6e
topology: v6e:2x2x1
jax: 0.10.0
libtpu: 0.0.40
codegen_flags: <defaults>
</compile_context>

<pallas_src>
import functools

import jax
import jax.numpy as jnp
from jax import lax
from jax.experimental import pallas as pl
from jax.experimental.pallas import tpu as pltpu

GROUP = 32  # samples per 128-lane row: 32 samples x 4 input features = 128 lanes


def _round_up(n, m):
    return -(-n // m) * m


def mlp_kernel(x_ref, w1_ref, b1_ref, w2_ref, b2_ref, w3_ref, b3_ref, o_ref):
    """One batch-row block: (BR, 128) interleaved samples -> (BR, 256) logits.

    Row layout: sample g of a row occupies lanes [4g, 4g+4) on input and
    lanes [8g, 8g+8) on output; the kron(I_32, W^T) weights map between the
    interleavings, so rows are fully independent (safe with partial blocks).
    """
    dot = functools.partial(jnp.dot, preferred_element_type=jnp.float32,
                            precision=lax.Precision.HIGHEST)  # f32-accurate MXU
    x = x_ref[...]                                             # (BR, 128)
    h = jnp.maximum(dot(x, w1_ref[...]) + b1_ref[...], 0.0)    # (BR, 128)
    h = jnp.maximum(dot(h, w2_ref[...]) + b2_ref[...], 0.0)    # (BR, 192)
    h = dot(h, w3_ref[...]) + b3_ref[...]                      # (BR, 256)
    o_ref[...] = h.astype(o_ref.dtype)


def _expand_params(params):
    """PyTorch-style (out,in)/(out,) params -> block-diagonal MXU operands.

    kron(I_32, W^T) applies Linear(in->out) independently to each group of
    `in` lanes and writes each sample's `out` features to its own group of
    `out` lanes.  Total ~350 KB of f32, VMEM-resident across the whole grid.
    """
    eye = jnp.eye(GROUP, dtype=jnp.float32)

    def expand(w, b):
        wb = jnp.kron(eye, w.T.astype(jnp.float32))            # (32*in, 32*out)
        bb = jnp.tile(b.astype(jnp.float32).reshape(-1), GROUP).reshape(1, -1)
        return wb, bb

    w1, b1, w2, b2, w3, b3 = params
    (w1b, b1b) = expand(w1, b1)
    (w2b, b2b) = expand(w2, b2)
    (w3b, b3b) = expand(w3, b3)
    return w1b, b1b, w2b, b2b, w3b, b3b


def _pick_block_rows(m, target):
    """Rows (32 samples each) per grid block.

    Multiple of 8 (sublane tiling), capped at `target` (1024 rows = 32768
    samples, ~1.5 MB HBM per step), and at most ~m/2 so the grid has >= 2
    blocks whenever there is enough work to shard across both v7x TensorCores.
    """
    if m <= 8:
        return max(m, 1)                 # single full block (block == array dims)
    half = max(8, ((m + 1) // 2) // 8 * 8)
    return min(target, half)


def neural_network_forward(x, params, *, block_rows=1024):
    """x: (B, 2, 2) float32 -> logits (B, 8) float32 (PyTorch forward semantics)."""
    w1, b1, w2, b2, w3, b3 = params
    in_dim = w1.shape[1]                                     # 4
    out_dim = w3.shape[0]                                     # 8
    B = x.shape[0]
    x_flat = x.reshape(B, in_dim).astype(jnp.float32)         # nn.Flatten -> (B, 4)

    # Pad only to a GROUP multiple (min 8 rows) so (B,4)->(B/32,128) is a free
    # row-major reshape; ragged grid tails are masked by Pallas, not padded.
    b_pad = max(8 * GROUP, _round_up(B, GROUP))
    if b_pad != B:
        x_flat = jnp.pad(x_flat, ((0, b_pad - B), (0, 0)))
    m = b_pad // GROUP
    x_rows = x_flat.reshape(m, GROUP * in_dim)                # (m, 128), free view

    w1b, b1b, w2b, b2b, w3b, b3b = _expand_params(params)

    br = _pick_block_rows(m, block_rows)
    grid = (pl.cdiv(m, br),)                                  # partial last block OK
    resident = lambda a: pl.BlockSpec(a.shape, lambda i: (0, 0))

    out_rows = pl.pallas_call(
        mlp_kernel,
        out_shape=jax.ShapeDtypeStruct((m, GROUP * out_dim), jnp.float32),
        grid=grid,
        in_specs=[
            pl.BlockSpec((br, GROUP * in_dim), lambda i: (i, 0)),   # x block
            resident(w1b), resident(b1b),
            resident(w2b), resident(b2b),
            resident(w3b), resident(b3b),
        ],
        out_specs=pl.BlockSpec((br, GROUP * out_dim), lambda i: (i, 0)),
        compiler_params=pltpu.CompilerParams(
            dimension_semantics=("parallel",)),               # dual-TC sharding on v7x
    )(x_rows, w1b, b1b, w2b, b2b, w3b, b3b)

    # (m, 256) -> (b_pad, 8) is a free row-major reshape; drop padded rows.
    return out_rows.reshape(b_pad, out_dim)[:B]


def init_params(key):
    """nn.Linear-style init (uniform +-1/sqrt(fan_in)); PyTorch (out,in) weights."""
    dims = [(4, 4), (6, 4), (8, 6)]                           # (out, in) per layer
    params = []
    for i, (fan_out, fan_in) in enumerate(dims):
        kw, kb = jax.random.split(jax.random.fold_in(key, i))
        bound = 1.0 / jnp.sqrt(float(fan_in))
        w = jax.random.uniform(kw, (fan_out, fan_in), jnp.float32, -bound, bound)
        b = jax.random.uniform(kb, (fan_out,), jnp.float32, -bound, bound)
        params += [w, b]
    return tuple(params)


def reference_forward(x, params):
    w1, b1, w2, b2, w3, b3 = params
    h = x.reshape(x.shape[0], -1)
    h = jnp.maximum(h @ w1.T + b1, 0.0)
    h = jnp.maximum(h @ w2.T + b2, 0.0)
    return h @ w3.T + b3


if __name__ == "__main__":
    key = jax.random.PRNGKey(0)
    params = init_params(key)

    # Spec-consistent input: X = torch.full((2, 2, 2), 3.0).
    x_small = jnp.full((2, 2, 2), 3.0, jnp.float32)
    logits = neural_network_forward(x_small, params)
    jax.block_until_ready(logits)
    assert logits.shape == (2, 8), logits.shape
    assert jnp.allclose(logits, reference_forward(x_small, params),
                        atol=1e-4, rtol=1e-4)

    # Ragged batch: pad-to-32 path, >=2 grid blocks, partial last block.
    x_mid = jax.random.normal(jax.random.fold_in(key, 100), (700, 2, 2), jnp.float32)
    logits_mid = neural_network_forward(x_mid, params)
    jax.block_until_ready(logits_mid)
    assert logits_mid.shape == (700, 8), logits_mid.shape
    assert jnp.allclose(logits_mid, reference_forward(x_mid, params),
                        atol=1e-4, rtol=1e-4)

    # Exactly tiled multi-block batch (no padding, no partial block).
    x_big = jax.random.normal(jax.random.fold_in(key, 200), (8192, 2, 2), jnp.float32)
    logits_big = neural_network_forward(x_big, params)
    jax.block_until_ready(logits_big)
    assert logits_big.shape == (8192, 8), logits_big.shape
    assert jnp.allclose(logits_big, reference_forward(x_big, params),
                        atol=1e-4, rtol=1e-4)

    print("KERNEL_OK")
</pallas_src>

<mosaic_0001>
module attributes {stable_mosaic.version = 11 : i64} {
  func.func @mlp_kernel(%arg0: i32, %arg1: memref<8x128xf32, #tpu.memory_space<vmem>>, %arg2: memref<128x128xf32, #tpu.memory_space<vmem>>, %arg3: memref<1x128xf32, #tpu.memory_space<vmem>>, %arg4: memref<128x192xf32, #tpu.memory_space<vmem>>, %arg5: memref<1x192xf32, #tpu.memory_space<vmem>>, %arg6: memref<192x256xf32, #tpu.memory_space<vmem>>, %arg7: memref<1x256xf32, #tpu.memory_space<vmem>>, %arg8: memref<8x256xf32, #tpu.memory_space<vmem>>) attributes {dimension_semantics = [#tpu.dimension_semantics<parallel>], iteration_bounds = array<i64: 1>, scalar_prefetch = 0 : i64, scratch_operands = 0 : i64, tpu.core_type = #tpu.core_type<tc>, window_params = [{transform_indices = @transform_0, window_bounds = array<i64: 8, 128>}, {pipeline_mode = #tpu.pipeline_mode<synchronous>, transform_indices = @transform_1, window_bounds = array<i64: 128, 128>}, {pipeline_mode = #tpu.pipeline_mode<synchronous>, transform_indices = @transform_2, window_bounds = array<i64: 1, 128>}, {pipeline_mode = #tpu.pipeline_mode<synchronous>, transform_indices = @transform_3, window_bounds = array<i64: 128, 192>}, {pipeline_mode = #tpu.pipeline_mode<synchronous>, transform_indices = @transform_4, window_bounds = array<i64: 1, 192>}, {pipeline_mode = #tpu.pipeline_mode<synchronous>, transform_indices = @transform_5, window_bounds = array<i64: 192, 256>}, {pipeline_mode = #tpu.pipeline_mode<synchronous>, transform_indices = @transform_6, window_bounds = array<i64: 1, 256>}, {transform_indices = @transform_7, window_bounds = array<i64: 8, 256>}]} {
    %c0 = arith.constant 0 : index
    %c0_0 = arith.constant 0 : index
    %0 = vector.load %arg1[%c0, %c0_0] : memref<8x128xf32, #tpu.memory_space<vmem>>, vector<8x128xf32>
    %c0_1 = arith.constant 0 : index
    %c0_2 = arith.constant 0 : index
    %1 = vector.load %arg2[%c0_1, %c0_2] : memref<128x128xf32, #tpu.memory_space<vmem>>, vector<128x128xf32>
    %cst = arith.constant dense<0.000000e+00> : vector<8x128xf32>
    %2 = tpu.matmul %0, %1, %cst {dimension_numbers = #tpu.dot_dimension_numbers<[1], [0], [0], [1], [0, 0, 1, 1], [], []>, precision = #tpu.contract_precision<fp32>} : vector<8x128xf32>, vector<128x128xf32>, vector<8x128xf32> -> vector<8x128xf32>
    %c0_3 = arith.constant 0 : index
    %c0_4 = arith.constant 0 : index
    %3 = vector.load %arg3[%c0_3, %c0_4] : memref<1x128xf32, #tpu.memory_space<vmem>>, vector<1x128xf32>
    %4 = vector.broadcast %3 : vector<1x128xf32> to vector<8x128xf32>
    %5 = arith.addf %2, %4 : vector<8x128xf32>
    %cst_5 = arith.constant 0.000000e+00 : f32
    %6 = vector.broadcast %cst_5 : f32 to vector<8x128xf32>
    %7 = arith.maximumf %5, %6 : vector<8x128xf32>
    %c0_6 = arith.constant 0 : index
    %c0_7 = arith.constant 0 : index
    %8 = vector.load %arg4[%c0_6, %c0_7] : memref<128x192xf32, #tpu.memory_space<vmem>>, vector<128x192xf32>
    %cst_8 = arith.constant dense<0.000000e+00> : vector<8x192xf32>
    %9 = tpu.matmul %7, %8, %cst_8 {dimension_numbers = #tpu.dot_dimension_numbers<[1], [0], [0], [1], [0, 0, 1, 1], [], []>, precision = #tpu.contract_precision<fp32>} : vector<8x128xf32>, vector<128x192xf32>, vector<8x192xf32> -> vector<8x192xf32>
    %c0_9 = arith.constant 0 : index
    %c0_10 = arith.constant 0 : index
    %10 = vector.load %arg5[%c0_9, %c0_10] : memref<1x192xf32, #tpu.memory_space<vmem>>, vector<1x192xf32>
    %11 = vector.broadcast %10 : vector<1x192xf32> to vector<8x192xf32>
    %12 = arith.addf %9, %11 : vector<8x192xf32>
    %cst_11 = arith.constant 0.000000e+00 : f32
    %13 = vector.broadcast %cst_11 : f32 to vector<8x192xf32>
    %14 = arith.maximumf %12, %13 : vector<8x192xf32>
    %c0_12 = arith.constant 0 : index
    %c0_13 = arith.constant 0 : index
    %15 = vector.load %arg6[%c0_12, %c0_13] : memref<192x256xf32, #tpu.memory_space<vmem>>, vector<192x256xf32>
    %cst_14 = arith.constant dense<0.000000e+00> : vector<8x256xf32>
    %16 = tpu.matmul %14, %15, %cst_14 {dimension_numbers = #tpu.dot_dimension_numbers<[1], [0], [0], [1], [0, 0, 1, 1], [], []>, precision = #tpu.contract_precision<fp32>} : vector<8x192xf32>, vector<192x256xf32>, vector<8x256xf32> -> vector<8x256xf32>
    %c0_15 = arith.constant 0 : index
    %c0_16 = arith.constant 0 : index
    %17 = vector.load %arg7[%c0_15, %c0_16] : memref<1x256xf32, #tpu.memory_space<vmem>>, vector<1x256xf32>
    %18 = vector.broadcast %17 : vector<1x256xf32> to vector<8x256xf32>
    %19 = arith.addf %16, %18 : vector<8x256xf32>
    %c0_17 = arith.constant 0 : index
    %c0_18 = arith.constant 0 : index
    %20 = vector.load %arg8[%c0_17, %c0_18] : memref<8x256xf32, #tpu.memory_space<vmem>>, vector<8x256xf32>
    tpu.vector_store %arg8[%c0_17, %c0_18], %19 {strides = array<i32>} : memref<8x256xf32, #tpu.memory_space<vmem>>, vector<8x256xf32>,
    return
  }
  func.func @transform_0(%arg0: i32) -> (i32, i32) {
    %c0_i32 = arith.constant 0 : i32
    %c0_i32_0 = arith.constant 0 : i32
    return %arg0, %c0_i32 : i32, i32
  }
  func.func @transform_1(%arg0: i32) -> (i32, i32) {
    %c0_i32 = arith.constant 0 : i32
    %c0_i32_0 = arith.constant 0 : i32
    %c0_i32_1 = arith.constant 0 : i32
    return %c0_i32, %c0_i32_0 : i32, i32
  }
  func.func @transform_2(%arg0: i32) -> (i32, i32) {
    %c0_i32 = arith.constant 0 : i32
    %c0_i32_0 = arith.constant 0 : i32
    %c0_i32_1 = arith.constant 0 : i32
    return %c0_i32, %c0_i32_0 : i32, i32
  }
  func.func @transform_3(%arg0: i32) -> (i32, i32) {
    %c0_i32 = arith.constant 0 : i32
    %c0_i32_0 = arith.constant 0 : i32
    %c0_i32_1 = arith.constant 0 : i32
    return %c0_i32, %c0_i32_0 : i32, i32
  }
  func.func @transform_4(%arg0: i32) -> (i32, i32) {
    %c0_i32 = arith.constant 0 : i32
    %c0_i32_0 = arith.constant 0 : i32
    %c0_i32_1 = arith.constant 0 : i32
    return %c0_i32, %c0_i32_0 : i32, i32
  }
  func.func @transform_5(%arg0: i32) -> (i32, i32) {
    %c0_i32 = arith.constant 0 : i32
    %c0_i32_0 = arith.constant 0 : i32
    %c0_i32_1 = arith.constant 0 : i32
    return %c0_i32, %c0_i32_0 : i32, i32
  }
  func.func @transform_6(%arg0: i32) -> (i32, i32) {
    %c0_i32 = arith.constant 0 : i32
    %c0_i32_0 = arith.constant 0 : i32
    %c0_i32_1 = arith.constant 0 : i32
    return %c0_i32, %c0_i32_0 : i32, i32
  }
  func.func @transform_7(%arg0: i32) -> (i32, i32) {
    %c0_i32 = arith.constant 0 : i32
    %c0_i32_0 = arith.constant 0 : i32
    return %arg0, %c0_i32 : i32, i32
  }
}

</mosaic_0001>

<llo_original>
// kernel: tpu_custom_call.1
$region0: #{tpu_custom_call.1}
  #allocation0 [shape = 'u32[]', space=smem, size = 0x4, offset = 0x4, fixed_abs, tag = 'smem constant byte address 0x4 - core index']
  #allocation1 [shape = 'u32[144,128]{1,0:T(1,128)}', space=vmem, size = 0x12000, scoped, tag = 'internal scratch']
  %s0 = inlined_call_operand.vmem [shape: f32[8,128], index: 0, kind: input, shape index: {}]
  %s1 = inlined_call_operand.hbm [shape: f32[128,128], index: 1, kind: input, shape index: {}]
  %s2 = inlined_call_operand.vmem [shape: f32[1,128], index: 2, kind: input, shape index: {}]
  %s3 = inlined_call_operand.vmem [shape: f32[128,192], index: 3, kind: input, shape index: {}]
  %s4 = inlined_call_operand.vmem [shape: f32[1,192], index: 4, kind: input, shape index: {}]
  %s5 = inlined_call_operand.vmem [shape: f32[192,256], index: 5, kind: input, shape index: {}]
  %s6 = inlined_call_operand.vmem [shape: f32[1,256], index: 6, kind: input, shape index: {}]
  %s7 = inlined_call_operand.hbm [shape: f32[8,256], index: 7, kind: output, shape index: {}]
  %s8 = sld [smem:[#allocation0]]
  $region42: #{tpu_custom_call.1} parent=0
    _
  %s10 = ssub.s32 1, %s8
  %s11 = scalar_select 0, %s10, %s8
  $region1: #{tpu_custom_call.1} parent=0
    #allocation2 [shape = 'u8[65536]{0}', space=vmem, size = 0x10000, scoped, tag = 'input window, operand 1, single buffered']
    #allocation3 [shape = 's32[1]{0}', space=sflag, size = 0x4, scoped, tag = 'scoped memory for tpu_custom_call.1']
    #allocation4 [shape = 's32[1]{0}', space=sflag, size = 0x4, scoped, tag = 'scoped memory for tpu_custom_call.1']
    #allocation5 [shape = 'u8[8192]{0}', space=vmem, size = 0x2000, scoped, tag = 'output window, operand 0, single buffered']
    %12 = vsyncpa [#allocation3], 0
    %13 = vsyncpa [#allocation4], 0
    // Predicated region
    $region2: #{tpu_custom_call.1} parent=1 // pred_check
      _
    $region3: #{tpu_custom_call.1} parent=1 // pred_check_branch
      %15 = sbr.rel (0) target = $region5
    $region4: #{tpu_custom_call.1} parent=1 // pred_region
      _
    $region5: #{tpu_custom_call.1} parent=1 // pred_fallthru
      _
    // Predicated region
    $region6: #{tpu_custom_call.1} parent=1 // pred_check
      _
    $region7: #{tpu_custom_call.1} parent=1 // pred_check_branch
      %17 = sbr.rel (0) target = $region9
    $region8: #{tpu_custom_call.1} parent=1 // pred_region
      %s19 = ssub.s32 2048, 2048
      %20 = vsyncadd [#allocation3], %s19
      %s21 = sshll.u32 [#allocation2], 4
      %s22 = int_to_ptr.vmem [resolvable:$true] %s21
      %27 = dma.hbm_to_vmem [thread:$0]  %s1, 2048, %s22, [#allocation3], 128, 128, 8
    $region9: #{tpu_custom_call.1} parent=1 // pred_fallthru
      _
    // Predicated region
    $region10: #{tpu_custom_call.1} parent=1 // pred_check
      _
    $region11: #{tpu_custom_call.1} parent=1 // pred_check_branch
      %29 = sbr.rel (0) target = $region13
    $region12: #{tpu_custom_call.1} parent=1 // pred_region
      _
    $region13: #{tpu_custom_call.1} parent=1 // pred_fallthru
      _
    // Predicated region
    $region14: #{tpu_custom_call.1} parent=1 // pred_check
      _
    $region15: #{tpu_custom_call.1} parent=1 // pred_check_branch
      %31 = sbr.rel (0) target = $region17
    $region16: #{tpu_custom_call.1} parent=1 // pred_region
      _
    $region17: #{tpu_custom_call.1} parent=1 // pred_fallthru
      _
    // Predicated region
    $region18: #{tpu_custom_call.1} parent=1 // pred_check
      _
    $region19: #{tpu_custom_call.1} parent=1 // pred_check_branch
      %33 = sbr.rel (0) target = $region21
    $region20: #{tpu_custom_call.1} parent=1 // pred_region
      _
    $region21: #{tpu_custom_call.1} parent=1 // pred_fallthru
      _
    // Predicated region
    $region22: #{tpu_custom_call.1} parent=1 // pred_check
      _
    $region23: #{tpu_custom_call.1} parent=1 // pred_check_branch
      %35 = sbr.rel (0) target = $region25
    $region24: #{tpu_custom_call.1} parent=1 // pred_region
      _
    $region25: #{tpu_custom_call.1} parent=1 // pred_fallthru
      _
    // Predicated region
    $region26: #{tpu_custom_call.1} parent=1 // pred_check
      _
    $region27: #{tpu_custom_call.1} parent=1 // pred_check_branch
      %37 = sbr.rel (0) target = $region29
    $region28: #{tpu_custom_call.1} parent=1 // pred_region
      _
    $region29: #{tpu_custom_call.1} parent=1 // pred_fallthru
      _
    // Predicated region
    $region30: #{tpu_custom_call.1} parent=1 // pred_check
      _
    $region31: #{tpu_custom_call.1} parent=1 // pred_check_branch
      %39 = sbr.rel (0) target = $region33
    $region32: #{tpu_custom_call.1} parent=1 // pred_region
      %40 = dma.done [#allocation3], 2048
    $region33: #{tpu_custom_call.1} parent=1 // pred_fallthru
      _
    %v41 = vld [vmem:[%s0] sm:$0xff]
    %v42 = vld [vmem:[#allocation2] sm:$0xff]
    %v43 = vld [vmem:[#allocation2 + $0x8] sm:$0xff]
    %v44 = vld [vmem:[#allocation2 + $0x10] sm:$0xff]
    %v45 = vld [vmem:[#allocation2 + $0x18] sm:$0xff]
    %v46 = vld [vmem:[#allocation2 + $0x20] sm:$0xff]
    %v47 = vld [vmem:[#allocation2 + $0x28] sm:$0xff]
    %v48 = vld [vmem:[#allocation2 + $0x30] sm:$0xff]
    %v49 = vld [vmem:[#allocation2 + $0x38] sm:$0xff]
    %v50 = vld [vmem:[#allocation2 + $0x40] sm:$0xff]
    %v51 = vld [vmem:[#allocation2 + $0x48] sm:$0xff]
    %v52 = vld [vmem:[#allocation2 + $0x50] sm:$0xff]
    %v53 = vld [vmem:[#allocation2 + $0x58] sm:$0xff]
    %v54 = vld [vmem:[#allocation2 + $0x60] sm:$0xff]
    %v55 = vld [vmem:[#allocation2 + $0x68] sm:$0xff]
    %v56 = vld [vmem:[#allocation2 + $0x70] sm:$0xff]
    %v57 = vld [vmem:[#allocation2 + $0x78] sm:$0xff]
    %v58 = vld [vmem:[%s2] sm:$0x1]
    %v60 = vlaneseq
    %v61 = vshrl.u32 %v60, 7
    %v62 = vsub.s32 0, %v61
    %v63 = vrot.slane %v58, %v62
    %65 = vmatprep.subr.mxu0 0.0
    %v66 = vand.u32 %v57, 4294901760
    %67 = vmatpush1.msra.mxu0 %v66
    %68 = vmatprep.subr.mxu0 0.0
    %v69 = vand.u32 %v56, 4294901760
    %70 = vmatpush1.msra.mxu0 %v69
    %71 = vmatprep.subr.mxu0 0.0
    %v72 = vand.u32 %v55, 4294901760
    %73 = vmatpush1.msra.mxu0 %v72
    %74 = vmatprep.subr.mxu0 0.0
    %v75 = vand.u32 %v54, 4294901760
    %76 = vmatpush1.msra.mxu0 %v75
    %77 = vmatprep.subr.mxu0 0.0
    %v78 = vand.u32 %v53, 4294901760
    %79 = vmatpush1.msra.mxu0 %v78
    %80 = vmatprep.subr.mxu0 0.0
    %v81 = vand.u32 %v52, 4294901760
    %82 = vmatpush1.msra.mxu0 %v81
    %83 = vmatprep.subr.mxu0 0.0
    %v84 = vand.u32 %v51, 4294901760
    %85 = vmatpush1.msra.mxu0 %v84
    %86 = vmatprep.subr.mxu0 0.0
    %v87 = vand.u32 %v50, 4294901760
    %88 = vmatpush1.msra.mxu0 %v87
    %89 = vmatprep.subr.mxu0 0.0
    %v90 = vand.u32 %v49, 4294901760
    %91 = vmatpush1.msra.mxu0 %v90
    %92 = vmatprep.subr.mxu0 0.0
    %v93 = vand.u32 %v48, 4294901760
    %94 = vmatpush1.msra.mxu0 %v93
    %95 = vmatprep.subr.mxu0 0.0
    %v96 = vand.u32 %v47, 4294901760
    %97 = vmatpush1.msra.mxu0 %v96
    %98 = vmatprep.subr.mxu0 0.0
    %v99 = vand.u32 %v46, 4294901760
    %100 = vmatpush1.msra.mxu0 %v99
    %101 = vmatprep.subr.mxu0 0.0
    %v102 = vand.u32 %v45, 4294901760
    %103 = vmatpush1.msra.mxu0 %v102
    %104 = vmatprep.subr.mxu0 0.0
    %v105 = vand.u32 %v44, 4294901760
    %106 = vmatpush1.msra.mxu0 %v105
    %107 = vmatprep.subr.mxu0 0.0
    %v108 = vand.u32 %v43, 4294901760
    %109 = vmatpush1.msra.mxu0 %v108
    %110 = vmatprep.subr.mxu0 0.0
    %v111 = vand.u32 %v42, 4294901760
    %112 = vmatpush1.msra.mxu0 %v111
    %113 = vmatprep.subr.mxu0 0.0
    %114 = vmatpush2.msra.mxu0 0.0
    %115 = vmatprep.subr.mxu0 0.0
    %116 = vmatpush2.msra.mxu0 0.0
    %117 = vmatprep.subr.mxu0 0.0
    %118 = vmatpush2.msra.mxu0 0.0
    %119 = vmatprep.subr.mxu0 0.0
    %120 = vmatpush2.msra.mxu0 0.0
    %121 = vmatprep.subr.mxu0 0.0
    %122 = vmatpush2.msra.mxu0 0.0
    %123 = vmatprep.subr.mxu0 0.0
    %124 = vmatpush2.msra.mxu0 0.0
    %125 = vmatprep.subr.mxu0 0.0
    %126 = vmatpush2.msra.mxu0 0.0
    %127 = vmatprep.subr.mxu0 0.0
    %128 = vmatpush2.msra.mxu0 0.0
    %129 = vmatprep.subr.mxu0 0.0
    %130 = vmatpush2.msra.mxu0 0.0
    %131 = vmatprep.subr.mxu0 0.0
    %132 = vmatpush2.msra.mxu0 0.0
    %133 = vmatprep.subr.mxu0 0.0
    %134 = vmatpush2.msra.mxu0 0.0
    %135 = vmatprep.subr.mxu0 0.0
    %136 = vmatpush2.msra.mxu0 0.0
    %137 = vmatprep.subr.mxu0 0.0
    %138 = vmatpush2.msra.mxu0 0.0
    %139 = vmatprep.subr.mxu0 0.0
    %140 = vmatpush2.msra.mxu0 0.0
    %141 = vmatprep.subr.mxu0 0.0
    %142 = vmatpush2.msra.mxu0 0.0
    %143 = vmatprep.subr.mxu0 0.0
    %144 = vmatpush2.msra.mxu0 0.0
    %145 = vmatprep.mubr.f32.mxu0 0.0
    %v146 = vand.u32 %v41, 4294901760
    %v147 = vsub.f32 %v41, %v146
    %v148 = vand.u32 %v147, 4294901760
    %v149 = vsub.f32 %v147, %v148
    %v150 = vand.u32 %v149, 4294901760
    %151 = vmatmul.mubr.f32.gmra.mxu0 %v150
    %v152 = vpop.f32.mrf.mxu0
    %v153 = vadd.f32 %v63, %v152
    %v154 = vpop.f32.mrf.mxu0
    %155 = vdwg.mxu0
    %156 = vmatprep.subr.mxu0 0.0
    %v157 = vand.u32 %v57, 4294901760
    %v158 = vsub.f32 %v57, %v157
    %v159 = vand.u32 %v158, 4294901760
    %v160 = vsub.f32 %v158, %v159
    %v161 = vand.u32 %v160, 4294901760
    %162 = vmatpush1.msra.mxu0 %v161
    %163 = vmatprep.subr.mxu0 0.0
    %v164 = vand.u32 %v56, 4294901760
    %v165 = vsub.f32 %v56, %v164
    %v166 = vand.u32 %v165, 4294901760
    %v167 = vsub.f32 %v165, %v166
    %v168 = vand.u32 %v167, 4294901760
    %169 = vmatpush1.msra.mxu0 %v168
    %170 = vmatprep.subr.mxu0 0.0
    %v171 = vand.u32 %v55, 4294901760
    %v172 = vsub.f32 %v55, %v171
    %v173 = vand.u32 %v172, 4294901760
    %v174 = vsub.f32 %v172, %v173
    %v175 = vand.u32 %v174, 4294901760
    %176 = vmatpush1.msra.mxu0 %v175
    %177 = vmatprep.subr.mxu0 0.0
    %v178 = vand.u32 %v54, 4294901760
    %v179 = vsub.f32 %v54, %v178
    %v180 = vand.u32 %v179, 4294901760
    %v181 = vsub.f32 %v179, %v180
    %v182 = vand.u32 %v181, 4294901760
    %183 = vmatpush1.msra.mxu0 %v182
    %184 = vmatprep.subr.mxu0 0.0
    %v185 = vand.u32 %v53, 4294901760
    %v186 = vsub.f32 %v53, %v185
    %v187 = vand.u32 %v186, 4294901760
    %v188 = vsub.f32 %v186, %v187
    %v189 = vand.u32 %v188, 4294901760
    %190 = vmatpush1.msra.mxu0 %v189
    %191 = vmatprep.subr.mxu0 0.0
    %v192 = vand.u32 %v52, 4294901760
    %v193 = vsub.f32 %v52, %v192
    %v194 = vand.u32 %v193, 4294901760
    %v195 = vsub.f32 %v193, %v194
    %v196 = vand.u32 %v195, 4294901760
    %197 = vmatpush1.msra.mxu0 %v196
    %198 = vmatprep.subr.mxu0 0.0
    %v199 = vand.u32 %v51, 4294901760
    %v200 = vsub.f32 %v51, %v199
    %v201 = vand.u32 %v200, 4294901760
    %v202 = vsub.f32 %v200, %v201
    %v203 = vand.u32 %v202, 4294901760
    %204 = vmatpush1.msra.mxu0 %v203
    %205 = vmatprep.subr.mxu0 0.0
    %v206 = vand.u32 %v50, 4294901760
    %v207 = vsub.f32 %v50, %v206
    %v208 = vand.u32 %v207, 4294901760
    %v209 = vsub.f32 %v207, %v208
    %v210 = vand.u32 %v209, 4294901760
    %211 = vmatpush1.msra.mxu0 %v210
    %212 = vmatprep.subr.mxu0 0.0
    %v213 = vand.u32 %v49, 4294901760
    %v214 = vsub.f32 %v49, %v213
    %v215 = vand.u32 %v214, 4294901760
    %v216 = vsub.f32 %v214, %v215
    %v217 = vand.u32 %v216, 4294901760
    %218 = vmatpush1.msra.mxu0 %v217
    %219 = vmatprep.subr.mxu0 0.0
    %v220 = vand.u32 %v48, 4294901760
    %v221 = vsub.f32 %v48, %v220
    %v222 = vand.u32 %v221, 4294901760
    %v223 = vsub.f32 %v221, %v222
    %v224 = vand.u32 %v223, 4294901760
    %225 = vmatpush1.msra.mxu0 %v224
    %226 = vmatprep.subr.mxu0 0.0
    %v227 = vand.u32 %v47, 4294901760
    %v228 = vsub.f32 %v47, %v227
    %v229 = vand.u32 %v228, 4294901760
    %v230 = vsub.f32 %v228, %v229
    %v231 = vand.u32 %v230, 4294901760
    %232 = vmatpush1.msra.mxu0 %v231
    %233 = vmatprep.subr.mxu0 0.0
    %v234 = vand.u32 %v46, 4294901760
    %v235 = vsub.f32 %v46, %v234
    %v236 = vand.u32 %v235, 4294901760
    %v237 = vsub.f32 %v235, %v236
    %v238 = vand.u32 %v237, 4294901760
    %239 = vmatpush1.msra.mxu0 %v238
    %240 = vmatprep.subr.mxu0 0.0
    %v241 = vand.u32 %v45, 4294901760
    %v242 = vsub.f32 %v45, %v241
    %v243 = vand.u32 %v242, 4294901760
    %v244 = vsub.f32 %v242, %v243
    %v245 = vand.u32 %v244, 4294901760
    %246 = vmatpush1.msra.mxu0 %v245
    %247 = vmatprep.subr.mxu0 0.0
    %v248 = vand.u32 %v44, 4294901760
    %v249 = vsub.f32 %v44, %v248
    %v250 = vand.u32 %v249, 4294901760
    %v251 = vsub.f32 %v249, %v250
    %v252 = vand.u32 %v251, 4294901760
    %253 = vmatpush1.msra.mxu0 %v252
    %254 = vmatprep.subr.mxu0 0.0
    %v255 = vand.u32 %v43, 4294901760
    %v256 = vsub.f32 %v43, %v255
    %v257 = vand.u32 %v256, 4294901760
    %v258 = vsub.f32 %v256, %v257
    %v259 = vand.u32 %v258, 4294901760
    %260 = vmatpush1.msra.mxu0 %v259
    %261 = vmatprep.subr.mxu0 0.0
    %v262 = vand.u32 %v42, 4294901760
    %v263 = vsub.f32 %v42, %v262
    %v264 = vand.u32 %v263, 4294901760
    %v265 = vsub.f32 %v263, %v264
    %v266 = vand.u32 %v265, 4294901760
    %267 = vmatpush1.msra.mxu0 %v266
    %268 = vmatprep.subr.mxu0 0.0
    %269 = vmatpush2.msra.mxu0 0.0
    %270 = vmatprep.subr.mxu0 0.0
    %271 = vmatpush2.msra.mxu0 0.0
    %272 = vmatprep.subr.mxu0 0.0
    %273 = vmatpush2.msra.mxu0 0.0
    %274 = vmatprep.subr.mxu0 0.0
    %275 = vmatpush2.msra.mxu0 0.0
    %276 = vmatprep.subr.mxu0 0.0
    %277 = vmatpush2.msra.mxu0 0.0
    %278 = vmatprep.subr.mxu0 0.0
    %279 = vmatpush2.msra.mxu0 0.0
    %280 = vmatprep.subr.mxu0 0.0
    %281 = vmatpush2.msra.mxu0 0.0
    %282 = vmatprep.subr.mxu0 0.0
    %283 = vmatpush2.msra.mxu0 0.0
    %284 = vmatprep.subr.mxu0 0.0
    %285 = vmatpush2.msra.mxu0 0.0
    %286 = vmatprep.subr.mxu0 0.0
    %287 = vmatpush2.msra.mxu0 0.0
    %288 = vmatprep.subr.mxu0 0.0
    %289 = vmatpush2.msra.mxu0 0.0
    %290 = vmatprep.subr.mxu0 0.0
    %291 = vmatpush2.msra.mxu0 0.0
    %292 = vmatprep.subr.mxu0 0.0
    %293 = vmatpush2.msra.mxu0 0.0
    %294 = vmatprep.subr.mxu0 0.0
    %295 = vmatpush2.msra.mxu0 0.0
    %296 = vmatprep.subr.mxu0 0.0
    %297 = vmatpush2.msra.mxu0 0.0
    %298 = vmatprep.subr.mxu0 0.0
    %299 = vmatpush2.msra.mxu0 0.0
    %300 = vmatprep.mubr.f32.mxu0 0.0
    %v301 = vand.u32 %v41, 4294901760
    %302 = vmatmul.mubr.f32.gmra.mxu0 %v301
    %v303 = vpop.f32.mrf.mxu0
    %v304 = vadd.f32 %v153, %v303
    %v305 = vpop.f32.mrf.mxu0
    %306 = vdwg.mxu0
    %307 = vmatprep.subr.mxu0 0.0
    %v308 = vand.u32 %v57, 4294901760
    %v309 = vsub.f32 %v57, %v308
    %310 = vmatpush1.msra.mxu0 %v309
    %311 = vmatprep.subr.mxu0 0.0
    %v312 = vand.u32 %v56, 4294901760
    %v313 = vsub.f32 %v56, %v312
    %314 = vmatpush1.msra.mxu0 %v313
    %315 = vmatprep.subr.mxu0 0.0
    %v316 = vand.u32 %v55, 4294901760
    %v317 = vsub.f32 %v55, %v316
    %318 = vmatpush1.msra.mxu0 %v317
    %319 = vmatprep.subr.mxu0 0.0
    %v320 = vand.u32 %v54, 4294901760
    %v321 = vsub.f32 %v54, %v320
    %322 = vmatpush1.msra.mxu0 %v321
    %323 = vmatprep.subr.mxu0 0.0
    %v324 = vand.u32 %v53, 4294901760
    %v325 = vsub.f32 %v53, %v324
    %326 = vmatpush1.msra.mxu0 %v325
    %327 = vmatprep.subr.mxu0 0.0
    %v328 = vand.u32 %v52, 4294901760
    %v329 = vsub.f32 %v52, %v328
    %330 = vmatpush1.msra.mxu0 %v329
    %331 = vmatprep.subr.mxu0 0.0
    %v332 = vand.u32 %v51, 4294901760
    %v333 = vsub.f32 %v51, %v332
    %334 = vmatpush1.msra.mxu0 %v333
    %335 = vmatprep.subr.mxu0 0.0
    %v336 = vand.u32 %v50, 4294901760
    %v337 = vsub.f32 %v50, %v336
    %338 = vmatpush1.msra.mxu0 %v337
    %339 = vmatprep.subr.mxu0 0.0
    %v340 = vand.u32 %v49, 4294901760
    %v341 = vsub.f32 %v49, %v340
    %342 = vmatpush1.msra.mxu0 %v341
    %343 = vmatprep.subr.mxu0 0.0
    %v344 = vand.u32 %v48, 4294901760
    %v345 = vsub.f32 %v48, %v344
    %346 = vmatpush1.msra.mxu0 %v345
    %347 = vmatprep.subr.mxu0 0.0
    %v348 = vand.u32 %v47, 4294901760
    %v349 = vsub.f32 %v47, %v348
    %350 = vmatpush1.msra.mxu0 %v349
    %351 = vmatprep.subr.mxu0 0.0
    %v352 = vand.u32 %v46, 4294901760
    %v353 = vsub.f32 %v46, %v352
    %354 = vmatpush1.msra.mxu0 %v353
    %355 = vmatprep.subr.mxu0 0.0
    %v356 = vand.u32 %v45, 4294901760
    %v357 = vsub.f32 %v45, %v356
    %358 = vmatpush1.msra.mxu0 %v357
    %359 = vmatprep.subr.mxu0 0.0
    %v360 = vand.u32 %v44, 4294901760
    %v361 = vsub.f32 %v44, %v360
    %362 = vmatpush1.msra.mxu0 %v361
    %363 = vmatprep.subr.mxu0 0.0
    %v364 = vand.u32 %v43, 4294901760
    %v365 = vsub.f32 %v43, %v364
    %366 = vmatpush1.msra.mxu0 %v365
    %367 = vmatprep.subr.mxu0 0.0
    %v368 = vand.u32 %v42, 4294901760
    %v369 = vsub.f32 %v42, %v368
    %370 = vmatpush1.msra.mxu0 %v369
    %371 = vmatprep.subr.mxu0 0.0
    %372 = vmatpush2.msra.mxu0 0.0
    %373 = vmatprep.subr.mxu0 0.0
    %374 = vmatpush2.msra.mxu0 0.0
    %375 = vmatprep.subr.mxu0 0.0
    %376 = vmatpush2.msra.mxu0 0.0
    %377 = vmatprep.subr.mxu0 0.0
    %378 = vmatpush2.msra.mxu0 0.0
    %379 = vmatprep.subr.mxu0 0.0
    %380 = vmatpush2.msra.mxu0 0.0
    %381 = vmatprep.subr.mxu0 0.0
    %382 = vmatpush2.msra.mxu0 0.0
    %383 = vmatprep.subr.mxu0 0.0
    %384 = vmatpush2.msra.mxu0 0.0
    %385 = vmatprep.subr.mxu0 0.0
    %386 = vmatpush2.msra.mxu0 0.0
    %387 = vmatprep.subr.mxu0 0.0
    %388 = vmatpush2.msra.mxu0 0.0
    %389 = vmatprep.subr.mxu0 0.0
    %390 = vmatpush2.msra.mxu0 0.0
    %391 = vmatprep.subr.mxu0 0.0
    %392 = vmatpush2.msra.mxu0 0.0
    %393 = vmatprep.subr.mxu0 0.0
    %394 = vmatpush2.msra.mxu0 0.0
    %395 = vmatprep.subr.mxu0 0.0
    %396 = vmatpush2.msra.mxu0 0.0
    %397 = vmatprep.subr.mxu0 0.0
    %398 = vmatpush2.msra.mxu0 0.0
    %399 = vmatprep.subr.mxu0 0.0
    %400 = vmatpush2.msra.mxu0 0.0
    %401 = vmatprep.subr.mxu0 0.0
    %402 = vmatpush2.msra.mxu0 0.0
    %403 = vmatprep.mubr.f32.mxu0 0.0
    %v404 = vand.u32 %v41, 4294901760
    %v405 = vsub.f32 %v41, %v404
    %406 = vmatmul.mubr.f32.gmra.mxu0 %v405
    %v407 = vpop.f32.mrf.mxu0
    %v408 = vadd.f32 %v304, %v407
    %v409 = vpop.f32.mrf.mxu0
    %410 = vdwg.mxu0
    %411 = vmatprep.subr.mxu0 0.0
    %v412 = vand.u32 %v57, 4294901760
    %413 = vmatpush1.msra.mxu0 %v412
    %414 = vmatprep.subr.mxu0 0.0
    %v415 = vand.u32 %v56, 4294901760
    %416 = vmatpush1.msra.mxu0 %v415
    %417 = vmatprep.subr.mxu0 0.0
    %v418 = vand.u32 %v55, 4294901760
    %419 = vmatpush1.msra.mxu0 %v418
    %420 = vmatprep.subr.mxu0 0.0
    %v421 = vand.u32 %v54, 4294901760
    %422 = vmatpush1.msra.mxu0 %v421
    %423 = vmatprep.subr.mxu0 0.0
    %v424 = vand.u32 %v53, 4294901760
    %425 = vmatpush1.msra.mxu0 %v424
    %426 = vmatprep.subr.mxu0 0.0
    %v427 = vand.u32 %v52, 4294901760
    %428 = vmatpush1.msra.mxu0 %v427
    %429 = vmatprep.subr.mxu0 0.0
    %v430 = vand.u32 %v51, 4294901760
    %431 = vmatpush1.msra.mxu0 %v430
    %432 = vmatprep.subr.mxu0 0.0
    %v433 = vand.u32 %v50, 4294901760
    %434 = vmatpush1.msra.mxu0 %v433
    %435 = vmatprep.subr.mxu0 0.0
    %v436 = vand.u32 %v49, 4294901760
    %437 = vmatpush1.msra.mxu0 %v436
    %438 = vmatprep.subr.mxu0 0.0
    %v439 = vand.u32 %v48, 4294901760
    %440 = vmatpush1.msra.mxu0 %v439
    %441 = vmatprep.subr.mxu0 0.0
    %v442 = vand.u32 %v47, 4294901760
    %443 = vmatpush1.msra.mxu0 %v442
    %444 = vmatprep.subr.mxu0 0.0
    %v445 = vand.u32 %v46, 4294901760
    %446 = vmatpush1.msra.mxu0 %v445
    %447 = vmatprep.subr.mxu0 0.0
    %v448 = vand.u32 %v45, 4294901760
    %449 = vmatpush1.msra.mxu0 %v448
    %450 = vmatprep.subr.mxu0 0.0
    %v451 = vand.u32 %v44, 4294901760
    %452 = vmatpush1.msra.mxu0 %v451
    %453 = vmatprep.subr.mxu0 0.0
    %v454 = vand.u32 %v43, 4294901760
    %455 = vmatpush1.msra.mxu0 %v454
    %456 = vmatprep.subr.mxu0 0.0
    %v457 = vand.u32 %v42, 4294901760
    %458 = vmatpush1.msra.mxu0 %v457
    %459 = vmatprep.subr.mxu0 0.0
    %460 = vmatpush2.msra.mxu0 0.0
    %461 = vmatprep.subr.mxu0 0.0
    %462 = vmatpush2.msra.mxu0 0.0
    %463 = vmatprep.subr.mxu0 0.0
    %464 = vmatpush2.msra.mxu0 0.0
    %465 = vmatprep.subr.mxu0 0.0
    %466 = vmatpush2.msra.mxu0 0.0
    %467 = vmatprep.subr.mxu0 0.0
    %468 = vmatpush2.msra.mxu0 0.0
    %469 = vmatprep.subr.mxu0 0.0
    %470 = vmatpush2.msra.mxu0 0.0
    %471 = vmatprep.subr.mxu0 0.0
    %472 = vmatpush2.msra.mxu0 0.0
    %473 = vmatprep.subr.mxu0 0.0
    %474 = vmatpush2.msra.mxu0 0.0
    %475 = vmatprep.subr.mxu0 0.0
    %476 = vmatpush2.msra.mxu0 0.0
    %477 = vmatprep.subr.mxu0 0.0
    %478 = vmatpush2.msra.mxu0 0.0
    %479 = vmatprep.subr.mxu0 0.0
    %480 = vmatpush2.msra.mxu0 0.0
    %481 = vmatprep.subr.mxu0 0.0
    %482 = vmatpush2.msra.mxu0 0.0
    %483 = vmatprep.subr.mxu0 0.0
    %484 = vmatpush2.msra.mxu0 0.0
    %485 = vmatprep.subr.mxu0 0.0
    %486 = vmatpush2.msra.mxu0 0.0
    %487 = vmatprep.subr.mxu0 0.0
    %488 = vmatpush2.msra.mxu0 0.0
    %489 = vmatprep.subr.mxu0 0.0
    %490 = vmatpush2.msra.mxu0 0.0
    %491 = vmatprep.mubr.f32.mxu0 0.0
    %v492 = vand.u32 %v41, 4294901760
    %v493 = vsub.f32 %v41, %v492
    %v494 = vand.u32 %v493, 4294901760
    %495 = vmatmul.mubr.f32.gmra.mxu0 %v494
    %v496 = vpop.f32.mrf.mxu0
    %v497 = vadd.f32 %v408, %v496
    %v498 = vpop.f32.mrf.mxu0
    %499 = vdwg.mxu0
    %500 = vmatprep.subr.mxu0 0.0
    %v501 = vand.u32 %v57, 4294901760
    %v502 = vsub.f32 %v57, %v501
    %v503 = vand.u32 %v502, 4294901760
    %504 = vmatpush1.msra.mxu0 %v503
    %505 = vmatprep.subr.mxu0 0.0
    %v506 = vand.u32 %v56, 4294901760
    %v507 = vsub.f32 %v56, %v506
    %v508 = vand.u32 %v507, 4294901760
    %509 = vmatpush1.msra.mxu0 %v508
    %510 = vmatprep.subr.mxu0 0.0
    %v511 = vand.u32 %v55, 4294901760
    %v512 = vsub.f32 %v55, %v511
    %v513 = vand.u32 %v512, 4294901760
    %514 = vmatpush1.msra.mxu0 %v513
    %515 = vmatprep.subr.mxu0 0.0
    %v516 = vand.u32 %v54, 4294901760
    %v517 = vsub.f32 %v54, %v516
    %v518 = vand.u32 %v517, 4294901760
    %519 = vmatpush1.msra.mxu0 %v518
    %520 = vmatprep.subr.mxu0 0.0
    %v521 = vand.u32 %v53, 4294901760
    %v522 = vsub.f32 %v53, %v521
    %v523 = vand.u32 %v522, 4294901760
    %524 = vmatpush1.msra.mxu0 %v523
    %525 = vmatprep.subr.mxu0 0.0
    %v526 = vand.u32 %v52, 4294901760
    %v527 = vsub.f32 %v52, %v526
    %v528 = vand.u32 %v527, 4294901760
    %529 = vmatpush1.msra.mxu0 %v528
    %530 = vmatprep.subr.mxu0 0.0
    %v531 = vand.u32 %v51, 4294901760
    %v532 = vsub.f32 %v51, %v531
    %v533 = vand.u32 %v532, 4294901760
    %534 = vmatpush1.msra.mxu0 %v533
    %535 = vmatprep.subr.mxu0 0.0
    %v536 = vand.u32 %v50, 4294901760
    %v537 = vsub.f32 %v50, %v536
    %v538 = vand.u32 %v537, 4294901760
    %539 = vmatpush1.msra.mxu0 %v538
    %540 = vmatprep.subr.mxu0 0.0
    %v541 = vand.u32 %v49, 4294901760
    %v542 = vsub.f32 %v49, %v541
    %v543 = vand.u32 %v542, 4294901760
    %544 = vmatpush1.msra.mxu0 %v543
    %545 = vmatprep.subr.mxu0 0.0
    %v546 = vand.u32 %v48, 4294901760
    %v547 = vsub.f32 %v48, %v546
    %v548 = vand.u32 %v547, 4294901760
    %549 = vmatpush1.msra.mxu0 %v548
    %550 = vmatprep.subr.mxu0 0.0
    %v551 = vand.u32 %v47, 4294901760
    %v552 = vsub.f32 %v47, %v551
    %v553 = vand.u32 %v552, 4294901760
    %554 = vmatpush1.msra.mxu0 %v553
    %555 = vmatprep.subr.mxu0 0.0
    %v556 = vand.u32 %v46, 4294901760
    %v557 = vsub.f32 %v46, %v556
    %v558 = vand.u32 %v557, 4294901760
    %559 = vmatpush1.msra.mxu0 %v558
    %560 = vmatprep.subr.mxu0 0.0
    %v561 = vand.u32 %v45, 4294901760
    %v562 = vsub.f32 %v45, %v561
    %v563 = vand.u32 %v562, 4294901760
    %564 = vmatpush1.msra.mxu0 %v563
    %565 = vmatprep.subr.mxu0 0.0
    %v566 = vand.u32 %v44, 4294901760
    %v567 = vsub.f32 %v44, %v566
    %v568 = vand.u32 %v567, 4294901760
    %569 = vmatpush1.msra.mxu0 %v568
    %570 = vmatprep.subr.mxu0 0.0
    %v571 = vand.u32 %v43, 4294901760
    %v572 = vsub.f32 %v43, %v571
    %v573 = vand.u32 %v572, 4294901760
    %574 = vmatpush1.msra.mxu0 %v573
    %575 = vmatprep.subr.mxu0 0.0
    %v576 = vand.u32 %v42, 4294901760
    %v577 = vsub.f32 %v42, %v576
    %v578 = vand.u32 %v577, 4294901760
    %579 = vmatpush1.msra.mxu0 %v578
    %580 = vmatprep.subr.mxu0 0.0
    %581 = vmatpush2.msra.mxu0 0.0
    %582 = vmatprep.subr.mxu0 0.0
    %583 = vmatpush2.msra.mxu0 0.0
    %584 = vmatprep.subr.mxu0 0.0
    %585 = vmatpush2.msra.mxu0 0.0
    %586 = vmatprep.subr.mxu0 0.0
    %587 = vmatpush2.msra.mxu0 0.0
    %588 = vmatprep.subr.mxu0 0.0
    %589 = vmatpush2.msra.mxu0 0.0
    %590 = vmatprep.subr.mxu0 0.0
    %591 = vmatpush2.msra.mxu0 0.0
    %592 = vmatprep.subr.mxu0 0.0
    %593 = vmatpush2.msra.mxu0 0.0
    %594 = vmatprep.subr.mxu0 0.0
    %595 = vmatpush2.msra.mxu0 0.0
    %596 = vmatprep.subr.mxu0 0.0
    %597 = vmatpush2.msra.mxu0 0.0
    %598 = vmatprep.subr.mxu0 0.0
    %599 = vmatpush2.msra.mxu0 0.0
    %600 = vmatprep.subr.mxu0 0.0
    %601 = vmatpush2.msra.mxu0 0.0
    %602 = vmatprep.subr.mxu0 0.0
    %603 = vmatpush2.msra.mxu0 0.0
    %604 = vmatprep.subr.mxu0 0.0
    %605 = vmatpush2.msra.mxu0 0.0
    %606 = vmatprep.subr.mxu0 0.0
    %607 = vmatpush2.msra.mxu0 0.0
    %608 = vmatprep.subr.mxu0 0.0
    %609 = vmatpush2.msra.mxu0 0.0
    %610 = vmatprep.subr.mxu0 0.0
    %611 = vmatpush2.msra.mxu0 0.0
    %612 = vmatprep.mubr.f32.mxu0 0.0
    %v613 = vand.u32 %v41, 4294901760
    %614 = vmatmul.mubr.f32.gmra.mxu0 %v613
    %v615 = vpop.f32.mrf.mxu0
    %v616 = vadd.f32 %v497, %v615
    %v617 = vpop.f32.mrf.mxu0
    %618 = vdwg.mxu0
    %619 = vmatprep.subr.mxu0 0.0
    %v620 = vand.u32 %v57, 4294901760
    %621 = vmatpush1.msra.mxu0 %v620
    %622 = vmatprep.subr.mxu0 0.0
    %v623 = vand.u32 %v56, 4294901760
    %624 = vmatpush1.msra.mxu0 %v623
    %625 = vmatprep.subr.mxu0 0.0
    %v626 = vand.u32 %v55, 4294901760
    %627 = vmatpush1.msra.mxu0 %v626
    %628 = vmatprep.subr.mxu0 0.0
    %v629 = vand.u32 %v54, 4294901760
    %630 = vmatpush1.msra.mxu0 %v629
    %631 = vmatprep.subr.mxu0 0.0
    %v632 = vand.u32 %v53, 4294901760
    %633 = vmatpush1.msra.mxu0 %v632
    %634 = vmatprep.subr.mxu0 0.0
    %v635 = vand.u32 %v52, 4294901760
    %636 = vmatpush1.msra.mxu0 %v635
    %637 = vmatprep.subr.mxu0 0.0
    %v638 = vand.u32 %v51, 4294901760
    %639 = vmatpush1.msra.mxu0 %v638
    %640 = vmatprep.subr.mxu0 0.0
    %v641 = vand.u32 %v50, 4294901760
    %642 = vmatpush1.msra.mxu0 %v641
    %643 = vmatprep.subr.mxu0 0.0
    %v644 = vand.u32 %v49, 4294901760
    %645 = vmatpush1.msra.mxu0 %v644
    %646 = vmatprep.subr.mxu0 0.0
    %v647 = vand.u32 %v48, 4294901760
    %648 = vmatpush1.msra.mxu0 %v647
    %649 = vmatprep.subr.mxu0 0.0
    %v650 = vand.u32 %v47, 4294901760
    %651 = vmatpush1.msra.mxu0 %v650
    %652 = vmatprep.subr.mxu0 0.0
    %v653 = vand.u32 %v46, 4294901760
    %654 = vmatpush1.msra.mxu0 %v653
    %655 = vmatprep.subr.mxu0 0.0
    %v656 = vand.u32 %v45, 4294901760
    %657 = vmatpush1.msra.mxu0 %v656
    %658 = vmatprep.subr.mxu0 0.0
    %v659 = vand.u32 %v44, 4294901760
    %660 = vmatpush1.msra.mxu0 %v659
    %661 = vmatprep.subr.mxu0 0.0
    %v662 = vand.u32 %v43, 4294901760
    %663 = vmatpush1.msra.mxu0 %v662
    %664 = vmatprep.subr.mxu0 0.0
    %v665 = vand.u32 %v42, 4294901760
    %666 = vmatpush1.msra.mxu0 %v665
    %667 = vmatprep.subr.mxu0 0.0
    %668 = vmatpush2.msra.mxu0 0.0
    %669 = vmatprep.subr.mxu0 0.0
    %670 = vmatpush2.msra.mxu0 0.0
    %671 = vmatprep.subr.mxu0 0.0
    %672 = vmatpush2.msra.mxu0 0.0
    %673 = vmatprep.subr.mxu0 0.0
    %674 = vmatpush2.msra.mxu0 0.0
    %675 = vmatprep.subr.mxu0 0.0
    %676 = vmatpush2.msra.mxu0 0.0
    %677 = vmatprep.subr.mxu0 0.0
    %678 = vmatpush2.msra.mxu0 0.0
    %679 = vmatprep.subr.mxu0 0.0
    %680 = vmatpush2.msra.mxu0 0.0
    %681 = vmatprep.subr.mxu0 0.0
    %682 = vmatpush2.msra.mxu0 0.0
    %683 = vmatprep.subr.mxu0 0.0
    %684 = vmatpush2.msra.mxu0 0.0
    %685 = vmatprep.subr.mxu0 0.0
    %686 = vmatpush2.msra.mxu0 0.0
    %687 = vmatprep.subr.mxu0 0.0
    %688 = vmatpush2.msra.mxu0 0.0
    %689 = vmatprep.subr.mxu0 0.0
    %690 = vmatpush2.msra.mxu0 0.0
    %691 = vmatprep.subr.mxu0 0.0
    %692 = vmatpush2.msra.mxu0 0.0
    %693 = vmatprep.subr.mxu0 0.0
    %694 = vmatpush2.msra.mxu0 0.0
    %695 = vmatprep.subr.mxu0 0.0
    %696 = vmatpush2.msra.mxu0 0.0
    %697 = vmatprep.subr.mxu0 0.0
    %698 = vmatpush2.msra.mxu0 0.0
    %699 = vmatprep.mubr.f32.mxu0 0.0
    %v700 = vand.u32 %v41, 4294901760
    %701 = vmatmul.mubr.f32.gmra.mxu0 %v700
    %v702 = vpop.f32.mrf.mxu0
    %v703 = vadd.f32 %v616, %v702
    %v704 = vpop.f32.mrf.mxu0
    %705 = vdwg.mxu0
    %v706 = vmax.f32 %v703, 0.0
    %v707 = vld [vmem:[%s3] sm:$0xff]
    %v708 = vld [vmem:[%s3 + $0x8] sm:$0xff]
    %v709 = vld [vmem:[%s3 + $0x10] sm:$0xff]
    %v710 = vld [vmem:[%s3 + $0x18] sm:$0xff]
    %v711 = vld [vmem:[%s3 + $0x20] sm:$0xff]
    %v712 = vld [vmem:[%s3 + $0x28] sm:$0xff]
    %v713 = vld [vmem:[%s3 + $0x30] sm:$0xff]
    %v714 = vld [vmem:[%s3 + $0x38] sm:$0xff]
    %v715 = vld [vmem:[%s3 + $0x40] sm:$0xff]
    %v716 = vld [vmem:[%s3 + $0x48] sm:$0xff]
    %v717 = vld [vmem:[%s3 + $0x50] sm:$0xff]
    %v718 = vld [vmem:[%s3 + $0x58] sm:$0xff]
    %v719 = vld [vmem:[%s3 + $0x60] sm:$0xff]
    %v720 = vld [vmem:[%s3 + $0x68] sm:$0xff]
    %v721 = vld [vmem:[%s3 + $0x70] sm:$0xff]
    %v722 = vld [vmem:[%s3 + $0x78] sm:$0xff]
    %v723 = vld [vmem:[%s3 + $0x80] sm:$0xff]
    %v724 = vld [vmem:[%s3 + $0x88] sm:$0xff]
    %v725 = vld [vmem:[%s3 + $0x90] sm:$0xff]
    %v726 = vld [vmem:[%s3 + $0x98] sm:$0xff]
    %v727 = vld [vmem:[%s3 + $0xa0] sm:$0xff]
    %v728 = vld [vmem:[%s3 + $0xa8] sm:$0xff]
    %v729 = vld [vmem:[%s3 + $0xb0] sm:$0xff]
    %v730 = vld [vmem:[%s3 + $0xb8] sm:$0xff]
    %v731 = vld [vmem:[%s3 + $0xc0] sm:$0xff]
    %v732 = vld [vmem:[%s3 + $0xc8] sm:$0xff]
    %v733 = vld [vmem:[%s3 + $0xd0] sm:$0xff]
    %v734 = vld [vmem:[%s3 + $0xd8] sm:$0xff]
    %v735 = vld [vmem:[%s3 + $0xe0] sm:$0xff]
    %v736 = vld [vmem:[%s3 + $0xe8] sm:$0xff]
    %v737 = vld [vmem:[%s3 + $0xf0] sm:$0xff]
    %v738 = vld [vmem:[%s3 + $0xf8] sm:$0xff]
    %v739 = vld [vmem:[%s4] sm:$0x3]
    %v741 = vlaneseq
    %v742 = vshrl.u32 %v741, 7
    %v743 = vsub.s32 0, %v742
    %v744 = vrot.slane %v739, %v743
    %v745 = vlaneseq
    %v746 = vshrl.u32 %v745, 7
    %v747 = vsub.s32 1, %v746
    %v748 = vrot.slane %v739, %v747
    %v751 = vand.u32 %v738, 4294901760
    %752 = vmatprep.subr.mxu0 %v751
    %v753 = vand.u32 %v737, 4294901760
    %754 = vmatpush1.msra.mxu0 %v753
    %v755 = vand.u32 %v736, 4294901760
    %756 = vmatprep.subr.mxu0 %v755
    %v757 = vand.u32 %v735, 4294901760
    %758 = vmatpush1.msra.mxu0 %v757
    %v759 = vand.u32 %v734, 4294901760
    %760 = vmatprep.subr.mxu0 %v759
    %v761 = vand.u32 %v733, 4294901760
    %762 = vmatpush1.msra.mxu0 %v761
    %v763 = vand.u32 %v732, 4294901760
    %764 = vmatprep.subr.mxu0 %v763
    %v765 = vand.u32 %v731, 4294901760
    %766 = vmatpush1.msra.mxu0 %v765
    %v767 = vand.u32 %v730, 4294901760
    %768 = vmatprep.subr.mxu0 %v767
    %v769 = vand.u32 %v729, 4294901760
    %770 = vmatpush1.msra.mxu0 %v769
    %v771 = vand.u32 %v728, 4294901760
    %772 = vmatprep.subr.mxu0 %v771
    %v773 = vand.u32 %v727, 4294901760
    %774 = vmatpush1.msra.mxu0 %v773
    %v775 = vand.u32 %v726, 4294901760
    %776 = vmatprep.subr.mxu0 %v775
    %v777 = vand.u32 %v725, 4294901760
    %778 = vmatpush1.msra.mxu0 %v777
    %v779 = vand.u32 %v724, 4294901760
    %780 = vmatprep.subr.mxu0 %v779
    %v781 = vand.u32 %v723, 4294901760
    %782 = vmatpush1.msra.mxu0 %v781
    %v783 = vand.u32 %v722, 4294901760
    %784 = vmatprep.subr.mxu0 %v783
    %v785 = vand.u32 %v721, 4294901760
    %786 = vmatpush1.msra.mxu0 %v785
    %v787 = vand.u32 %v720, 4294901760
    %788 = vmatprep.subr.mxu0 %v787
    %v789 = vand.u32 %v719, 4294901760
    %790 = vmatpush1.msra.mxu0 %v789
    %v791 = vand.u32 %v718, 4294901760
    %792 = vmatprep.subr.mxu0 %v791
    %v793 = vand.u32 %v717, 4294901760
    %794 = vmatpush1.msra.mxu0 %v793
    %v795 = vand.u32 %v716, 4294901760
    %796 = vmatprep.subr.mxu0 %v795
    %v797 = vand.u32 %v715, 4294901760
    %798 = vmatpush1.msra.mxu0 %v797
    %v799 = vand.u32 %v714, 4294901760
    %800 = vmatprep.subr.mxu0 %v799
    %v801 = vand.u32 %v713, 4294901760
    %802 = vmatpush1.msra.mxu0 %v801
    %v803 = vand.u32 %v712, 4294901760
    %804 = vmatprep.subr.mxu0 %v803
    %v805 = vand.u32 %v711, 4294901760
    %806 = vmatpush1.msra.mxu0 %v805
    %v807 = vand.u32 %v710, 4294901760
    %808 = vmatprep.subr.mxu0 %v807
    %v809 = vand.u32 %v709, 4294901760
    %810 = vmatpush1.msra.mxu0 %v809
    %v811 = vand.u32 %v708, 4294901760
    %812 = vmatprep.subr.mxu0 %v811
    %v813 = vand.u32 %v707, 4294901760
    %814 = vmatpush1.msra.mxu0 %v813
    %815 = vmatprep.subr.mxu0 0.0
    %816 = vmatpush2.msra.mxu0 0.0
    %817 = vmatprep.subr.mxu0 0.0
    %818 = vmatpush2.msra.mxu0 0.0
    %819 = vmatprep.subr.mxu0 0.0
    %820 = vmatpush2.msra.mxu0 0.0
    %821 = vmatprep.subr.mxu0 0.0
    %822 = vmatpush2.msra.mxu0 0.0
    %823 = vmatprep.subr.mxu0 0.0
    %824 = vmatpush2.msra.mxu0 0.0
    %825 = vmatprep.subr.mxu0 0.0
    %826 = vmatpush2.msra.mxu0 0.0
    %827 = vmatprep.subr.mxu0 0.0
    %828 = vmatpush2.msra.mxu0 0.0
    %829 = vmatprep.subr.mxu0 0.0
    %830 = vmatpush2.msra.mxu0 0.0
    %831 = vmatprep.subr.mxu0 0.0
    %832 = vmatpush2.msra.mxu0 0.0
    %833 = vmatprep.subr.mxu0 0.0
    %834 = vmatpush2.msra.mxu0 0.0
    %835 = vmatprep.subr.mxu0 0.0
    %836 = vmatpush2.msra.mxu0 0.0
    %837 = vmatprep.subr.mxu0 0.0
    %838 = vmatpush2.msra.mxu0 0.0
    %839 = vmatprep.subr.mxu0 0.0
    %840 = vmatpush2.msra.mxu0 0.0
    %841 = vmatprep.subr.mxu0 0.0
    %842 = vmatpush2.msra.mxu0 0.0
    %843 = vmatprep.subr.mxu0 0.0
    %844 = vmatpush2.msra.mxu0 0.0
    %845 = vmatprep.subr.mxu0 0.0
    %846 = vmatpush2.msra.mxu0 0.0
    %847 = vmatprep.mubr.f32.mxu0 0.0
    %v848 = vand.u32 %v706, 4294901760
    %v849 = vsub.f32 %v706, %v848
    %v850 = vand.u32 %v849, 4294901760
    %v851 = vsub.f32 %v849, %v850
    %v852 = vand.u32 %v851, 4294901760
    %853 = vmatmul.mubr.f32.gmra.mxu0 %v852
    %v854 = vpop.f32.mrf.mxu0
    %v855 = vadd.f32 %v744, %v854
    %v856 = vpop.f32.mrf.mxu0
    %v857 = vadd.f32 %v748, %v856
    %858 = vdwg.mxu0
    %v859 = vand.u32 %v738, 4294901760
    %v860 = vsub.f32 %v738, %v859
    %v861 = vand.u32 %v860, 4294901760
    %v862 = vsub.f32 %v860, %v861
    %v863 = vand.u32 %v862, 4294901760
    %864 = vmatprep.subr.mxu0 %v863
    %v865 = vand.u32 %v737, 4294901760
    %v866 = vsub.f32 %v737, %v865
    %v867 = vand.u32 %v866, 4294901760
    %v868 = vsub.f32 %v866, %v867
    %v869 = vand.u32 %v868, 4294901760
    %870 = vmatpush1.msra.mxu0 %v869
    %v871 = vand.u32 %v736, 4294901760
    %v872 = vsub.f32 %v736, %v871
    %v873 = vand.u32 %v872, 4294901760
    %v874 = vsub.f32 %v872, %v873
    %v875 = vand.u32 %v874, 4294901760
    %876 = vmatprep.subr.mxu0 %v875
    %v877 = vand.u32 %v735, 4294901760
    %v878 = vsub.f32 %v735, %v877
    %v879 = vand.u32 %v878, 4294901760
    %v880 = vsub.f32 %v878, %v879
    %v881 = vand.u32 %v880, 4294901760
    %882 = vmatpush1.msra.mxu0 %v881
    %v883 = vand.u32 %v734, 4294901760
    %v884 = vsub.f32 %v734, %v883
    %v885 = vand.u32 %v884, 4294901760
    %v886 = vsub.f32 %v884, %v885
    %v887 = vand.u32 %v886, 4294901760
    %888 = vmatprep.subr.mxu0 %v887
    %v889 = vand.u32 %v733, 4294901760
    %v890 = vsub.f32 %v733, %v889
    %v891 = vand.u32 %v890, 4294901760
    %v892 = vsub.f32 %v890, %v891
    %v893 = vand.u32 %v892, 4294901760
    %894 = vmatpush1.msra.mxu0 %v893
    %v895 = vand.u32 %v732, 4294901760
    %v896 = vsub.f32 %v732, %v895
    %v897 = vand.u32 %v896, 4294901760
    %v898 = vsub.f32 %v896, %v897
    %v899 = vand.u32 %v898, 4294901760
    %900 = vmatprep.subr.mxu0 %v899
    %v901 = vand.u32 %v731, 4294901760
    %v902 = vsub.f32 %v731, %v901
    %v903 = vand.u32 %v902, 4294901760
    %v904 = vsub.f32 %v902, %v903
    %v905 = vand.u32 %v904, 4294901760
    %906 = vmatpush1.msra.mxu0 %v905
    %v907 = vand.u32 %v730, 4294901760
    %v908 = vsub.f32 %v730, %v907
    %v909 = vand.u32 %v908, 4294901760
    %v910 = vsub.f32 %v908, %v909
    %v911 = vand.u32 %v910, 4294901760
    %912 = vmatprep.subr.mxu0 %v911
    %v913 = vand.u32 %v729, 4294901760
    %v914 = vsub.f32 %v729, %v913
    %v915 = vand.u32 %v914, 4294901760
    %v916 = vsub.f32 %v914, %v915
    %v917 = vand.u32 %v916, 4294901760
    %918 = vmatpush1.msra.mxu0 %v917
    %v919 = vand.u32 %v728, 4294901760
    %v920 = vsub.f32 %v728, %v919
    %v921 = vand.u32 %v920, 4294901760
    %v922 = vsub.f32 %v920, %v921
    %v923 = vand.u32 %v922, 4294901760
    %924 = vmatprep.subr.mxu0 %v923
    %v925 = vand.u32 %v727, 4294901760
    %v926 = vsub.f32 %v727, %v925
    %v927 = vand.u32 %v926, 4294901760
    %v928 = vsub.f32 %v926, %v927
    %v929 = vand.u32 %v928, 4294901760
    %930 = vmatpush1.msra.mxu0 %v929
    %v931 = vand.u32 %v726, 4294901760
    %v932 = vsub.f32 %v726, %v931
    %v933 = vand.u32 %v932, 4294901760
    %v934 = vsub.f32 %v932, %v933
    %v935 = vand.u32 %v934, 4294901760
    %936 = vmatprep.subr.mxu0 %v935
    %v937 = vand.u32 %v725, 4294901760
    %v938 = vsub.f32 %v725, %v937
    %v939 = vand.u32 %v938, 4294901760
    %v940 = vsub.f32 %v938, %v939
    %v941 = vand.u32 %v940, 4294901760
    %942 = vmatpush1.msra.mxu0 %v941
    %v943 = vand.u32 %v724, 4294901760
    %v944 = vsub.f32 %v724, %v943
    %v945 = vand.u32 %v944, 4294901760
    %v946 = vsub.f32 %v944, %v945
    %v947 = vand.u32 %v946, 4294901760
    %948 = vmatprep.subr.mxu0 %v947
    %v949 = vand.u32 %v723, 4294901760
    %v950 = vsub.f32 %v723, %v949
    %v951 = vand.u32 %v950, 4294901760
    %v952 = vsub.f32 %v950, %v951
    %v953 = vand.u32 %v952, 4294901760
    %954 = vmatpush1.msra.mxu0 %v953
    %v955 = vand.u32 %v722, 4294901760
    %v956 = vsub.f32 %v722, %v955
    %v957 = vand.u32 %v956, 4294901760
    %v958 = vsub.f32 %v956, %v957
    %v959 = vand.u32 %v958, 4294901760
    %960 = vmatprep.subr.mxu0 %v959
    %v961 = vand.u32 %v721, 4294901760
    %v962 = vsub.f32 %v721, %v961
    %v963 = vand.u32 %v962, 4294901760
    %v964 = vsub.f32 %v962, %v963
    %v965 = vand.u32 %v964, 4294901760
    %966 = vmatpush1.msra.mxu0 %v965
    %v967 = vand.u32 %v720, 4294901760
    %v968 = vsub.f32 %v720, %v967
    %v969 = vand.u32 %v968, 4294901760
    %v970 = vsub.f32 %v968, %v969
    %v971 = vand.u32 %v970, 4294901760
    %972 = vmatprep.subr.mxu0 %v971
    %v973 = vand.u32 %v719, 4294901760
    %v974 = vsub.f32 %v719, %v973
    %v975 = vand.u32 %v974, 4294901760
    %v976 = vsub.f32 %v974, %v975
    %v977 = vand.u32 %v976, 4294901760
    %978 = vmatpush1.msra.mxu0 %v977
    %v979 = vand.u32 %v718, 4294901760
    %v980 = vsub.f32 %v718, %v979
    %v981 = vand.u32 %v980, 4294901760
    %v982 = vsub.f32 %v980, %v981
    %v983 = vand.u32 %v982, 4294901760
    %984 = vmatprep.subr.mxu0 %v983
    %v985 = vand.u32 %v717, 4294901760
    %v986 = vsub.f32 %v717, %v985
    %v987 = vand.u32 %v986, 4294901760
    %v988 = vsub.f32 %v986, %v987
    %v989 = vand.u32 %v988, 4294901760
    %990 = vmatpush1.msra.mxu0 %v989
    %v991 = vand.u32 %v716, 4294901760
    %v992 = vsub.f32 %v716, %v991
    %v993 = vand.u32 %v992, 4294901760
    %v994 = vsub.f32 %v992, %v993
    %v995 = vand.u32 %v994, 4294901760
    %996 = vmatprep.subr.mxu0 %v995
    %v997 = vand.u32 %v715, 4294901760
    %v998 = vsub.f32 %v715, %v997
    %v999 = vand.u32 %v998, 4294901760
    %v1000 = vsub.f32 %v998, %v999
    %v1001 = vand.u32 %v1000, 4294901760
    %1002 = vmatpush1.msra.mxu0 %v1001
    %v1003 = vand.u32 %v714, 4294901760
    %v1004 = vsub.f32 %v714, %v1003
    %v1005 = vand.u32 %v1004, 4294901760
    %v1006 = vsub.f32 %v1004, %v1005
    %v1007 = vand.u32 %v1006, 4294901760
    %1008 = vmatprep.subr.mxu0 %v1007
    %v1009 = vand.u32 %v713, 4294901760
    %v1010 = vsub.f32 %v713, %v1009
    %v1011 = vand.u32 %v1010, 4294901760
    %v1012 = vsub.f32 %v1010, %v1011
    %v1013 = vand.u32 %v1012, 4294901760
    %1014 = vmatpush1.msra.mxu0 %v1013
    %v1015 = vand.u32 %v712, 4294901760
    %v1016 = vsub.f32 %v712, %v1015
    %v1017 = vand.u32 %v1016, 4294901760
    %v1018 = vsub.f32 %v1016, %v1017
    %v1019 = vand.u32 %v1018, 4294901760
    %1020 = vmatprep.subr.mxu0 %v1019
    %v1021 = vand.u32 %v711, 4294901760
    %v1022 = vsub.f32 %v711, %v1021
    %v1023 = vand.u32 %v1022, 4294901760
    %v1024 = vsub.f32 %v1022, %v1023
    %v1025 = vand.u32 %v1024, 4294901760
    %1026 = vmatpush1.msra.mxu0 %v1025
    %v1027 = vand.u32 %v710, 4294901760
    %v1028 = vsub.f32 %v710, %v1027
    %v1029 = vand.u32 %v1028, 4294901760
    %v1030 = vsub.f32 %v1028, %v1029
    %v1031 = vand.u32 %v1030, 4294901760
    %1032 = vmatprep.subr.mxu0 %v1031
    %v1033 = vand.u32 %v709, 4294901760
    %v1034 = vsub.f32 %v709, %v1033
    %v1035 = vand.u32 %v1034, 4294901760
    %v1036 = vsub.f32 %v1034, %v1035
    %v1037 = vand.u32 %v1036, 4294901760
    %1038 = vmatpush1.msra.mxu0 %v1037
    %v1039 = vand.u32 %v708, 4294901760
    %v1040 = vsub.f32 %v708, %v1039
    %v1041 = vand.u32 %v1040, 4294901760
    %v1042 = vsub.f32 %v1040, %v1041
    %v1043 = vand.u32 %v1042, 4294901760
    %1044 = vmatprep.subr.mxu0 %v1043
    %v1045 = vand.u32 %v707, 4294901760
    %v1046 = vsub.f32 %v707, %v1045
    %v1047 = vand.u32 %v1046, 4294901760
    %v1048 = vsub.f32 %v1046, %v1047
    %v1049 = vand.u32 %v1048, 4294901760
    %1050 = vmatpush1.msra.mxu0 %v1049
    %1051 = vmatprep.subr.mxu0 0.0
    %1052 = vmatpush2.msra.mxu0 0.0
    %1053 = vmatprep.subr.mxu0 0.0
    %1054 = vmatpush2.msra.mxu0 0.0
    %1055 = vmatprep.subr.mxu0 0.0
    %1056 = vmatpush2.msra.mxu0 0.0
    %1057 = vmatprep.subr.mxu0 0.0
    %1058 = vmatpush2.msra.mxu0 0.0
    %1059 = vmatprep.subr.mxu0 0.0
    %1060 = vmatpush2.msra.mxu0 0.0
    %1061 = vmatprep.subr.mxu0 0.0
    %1062 = vmatpush2.msra.mxu0 0.0
    %1063 = vmatprep.subr.mxu0 0.0
    %1064 = vmatpush2.msra.mxu0 0.0
    %1065 = vmatprep.subr.mxu0 0.0
    %1066 = vmatpush2.msra.mxu0 0.0
    %1067 = vmatprep.subr.mxu0 0.0
    %1068 = vmatpush2.msra.mxu0 0.0
    %1069 = vmatprep.subr.mxu0 0.0
    %1070 = vmatpush2.msra.mxu0 0.0
    %1071 = vmatprep.subr.mxu0 0.0
    %1072 = vmatpush2.msra.mxu0 0.0
    %1073 = vmatprep.subr.mxu0 0.0
    %1074 = vmatpush2.msra.mxu0 0.0
    %1075 = vmatprep.subr.mxu0 0.0
    %1076 = vmatpush2.msra.mxu0 0.0
    %1077 = vmatprep.subr.mxu0 0.0
    %1078 = vmatpush2.msra.mxu0 0.0
    %1079 = vmatprep.subr.mxu0 0.0
    %1080 = vmatpush2.msra.mxu0 0.0
    %1081 = vmatprep.subr.mxu0 0.0
    %1082 = vmatpush2.msra.mxu0 0.0
    %1083 = vmatprep.mubr.f32.mxu0 0.0
    %v1084 = vand.u32 %v706, 4294901760
    %1085 = vmatmul.mubr.f32.gmra.mxu0 %v1084
    %v1086 = vpop.f32.mrf.mxu0
    %v1087 = vadd.f32 %v855, %v1086
    %v1088 = vpop.f32.mrf.mxu0
    %v1089 = vadd.f32 %v857, %v1088
    %1090 = vdwg.mxu0
    %v1091 = vand.u32 %v738, 4294901760
    %v1092 = vsub.f32 %v738, %v1091
    %1093 = vmatprep.subr.mxu0 %v1092
    %v1094 = vand.u32 %v737, 4294901760
    %v1095 = vsub.f32 %v737, %v1094
    %1096 = vmatpush1.msra.mxu0 %v1095
    %v1097 = vand.u32 %v736, 4294901760
    %v1098 = vsub.f32 %v736, %v1097
    %1099 = vmatprep.subr.mxu0 %v1098
    %v1100 = vand.u32 %v735, 4294901760
    %v1101 = vsub.f32 %v735, %v1100
    %1102 = vmatpush1.msra.mxu0 %v1101
    %v1103 = vand.u32 %v734, 4294901760
    %v1104 = vsub.f32 %v734, %v1103
    %1105 = vmatprep.subr.mxu0 %v1104
    %v1106 = vand.u32 %v733, 4294901760
    %v1107 = vsub.f32 %v733, %v1106
    %1108 = vmatpush1.msra.mxu0 %v1107
    %v1109 = vand.u32 %v732, 4294901760
    %v1110 = vsub.f32 %v732, %v1109
    %1111 = vmatprep.subr.mxu0 %v1110
    %v1112 = vand.u32 %v731, 4294901760
    %v1113 = vsub.f32 %v731, %v1112
    %1114 = vmatpush1.msra.mxu0 %v1113
    %v1115 = vand.u32 %v730, 4294901760
    %v1116 = vsub.f32 %v730, %v1115
    %1117 = vmatprep.subr.mxu0 %v1116
    %v1118 = vand.u32 %v729, 4294901760
    %v1119 = vsub.f32 %v729, %v1118
    %1120 = vmatpush1.msra.mxu0 %v1119
    %v1121 = vand.u32 %v728, 4294901760
    %v1122 = vsub.f32 %v728, %v1121
    %1123 = vmatprep.subr.mxu0 %v1122
    %v1124 = vand.u32 %v727, 4294901760
    %v1125 = vsub.f32 %v727, %v1124
    %1126 = vmatpush1.msra.mxu0 %v1125
    %v1127 = vand.u32 %v726, 4294901760
    %v1128 = vsub.f32 %v726, %v1127
    %1129 = vmatprep.subr.mxu0 %v1128
    %v1130 = vand.u32 %v725, 4294901760
    %v1131 = vsub.f32 %v725, %v1130
    %1132 = vmatpush1.msra.mxu0 %v1131
    %v1133 = vand.u32 %v724, 4294901760
    %v1134 = vsub.f32 %v724, %v1133
    %1135 = vmatprep.subr.mxu0 %v1134
    %v1136 = vand.u32 %v723, 4294901760
    %v1137 = vsub.f32 %v723, %v1136
    %1138 = vmatpush1.msra.mxu0 %v1137
    %v1139 = vand.u32 %v722, 4294901760
    %v1140 = vsub.f32 %v722, %v1139
    %1141 = vmatprep.subr.mxu0 %v1140
    %v1142 = vand.u32 %v721, 4294901760
    %v1143 = vsub.f32 %v721, %v1142
    %1144 = vmatpush1.msra.mxu0 %v1143
    %v1145 = vand.u32 %v720, 4294901760
    %v1146 = vsub.f32 %v720, %v1145
    %1147 = vmatprep.subr.mxu0 %v1146
    %v1148 = vand.u32 %v719, 4294901760
    %v1149 = vsub.f32 %v719, %v1148
    %1150 = vmatpush1.msra.mxu0 %v1149
    %v1151 = vand.u32 %v718, 4294901760
    %v1152 = vsub.f32 %v718, %v1151
    %1153 = vmatprep.subr.mxu0 %v1152
    %v1154 = vand.u32 %v717, 4294901760
    %v1155 = vsub.f32 %v717, %v1154
    %1156 = vmatpush1.msra.mxu0 %v1155
    %v1157 = vand.u32 %v716, 4294901760
    %v1158 = vsub.f32 %v716, %v1157
    %1159 = vmatprep.subr.mxu0 %v1158
    %v1160 = vand.u32 %v715, 4294901760
    %v1161 = vsub.f32 %v715, %v1160
    %1162 = vmatpush1.msra.mxu0 %v1161
    %v1163 = vand.u32 %v714, 4294901760
    %v1164 = vsub.f32 %v714, %v1163
    %1165 = vmatprep.subr.mxu0 %v1164
    %v1166 = vand.u32 %v713, 4294901760
    %v1167 = vsub.f32 %v713, %v1166
    %1168 = vmatpush1.msra.mxu0 %v1167
    %v1169 = vand.u32 %v712, 4294901760
    %v1170 = vsub.f32 %v712, %v1169
    %1171 = vmatprep.subr.mxu0 %v1170
    %v1172 = vand.u32 %v711, 4294901760
    %v1173 = vsub.f32 %v711, %v1172
    %1174 = vmatpush1.msra.mxu0 %v1173
    %v1175 = vand.u32 %v710, 4294901760
    %v1176 = vsub.f32 %v710, %v1175
    %1177 = vmatprep.subr.mxu0 %v1176
    %v1178 = vand.u32 %v709, 4294901760
    %v1179 = vsub.f32 %v709, %v1178
    %1180 = vmatpush1.msra.mxu0 %v1179
    %v1181 = vand.u32 %v708, 4294901760
    %v1182 = vsub.f32 %v708, %v1181
    %1183 = vmatprep.subr.mxu0 %v1182
    %v1184 = vand.u32 %v707, 4294901760
    %v1185 = vsub.f32 %v707, %v1184
    %1186 = vmatpush1.msra.mxu0 %v1185
    %1187 = vmatprep.subr.mxu0 0.0
    %1188 = vmatpush2.msra.mxu0 0.0
    %1189 = vmatprep.subr.mxu0 0.0
    %1190 = vmatpush2.msra.mxu0 0.0
    %1191 = vmatprep.subr.mxu0 0.0
    %1192 = vmatpush2.msra.mxu0 0.0
    %1193 = vmatprep.subr.mxu0 0.0
    %1194 = vmatpush2.msra.mxu0 0.0
    %1195 = vmatprep.subr.mxu0 0.0
    %1196 = vmatpush2.msra.mxu0 0.0
    %1197 = vmatprep.subr.mxu0 0.0
    %1198 = vmatpush2.msra.mxu0 0.0
    %1199 = vmatprep.subr.mxu0 0.0
    %1200 = vmatpush2.msra.mxu0 0.0
    %1201 = vmatprep.subr.mxu0 0.0
    %1202 = vmatpush2.msra.mxu0 0.0
    %1203 = vmatprep.subr.mxu0 0.0
    %1204 = vmatpush2.msra.mxu0 0.0
    %1205 = vmatprep.subr.mxu0 0.0
    %1206 = vmatpush2.msra.mxu0 0.0
    %1207 = vmatprep.subr.mxu0 0.0
    %1208 = vmatpush2.msra.mxu0 0.0
    %1209 = vmatprep.subr.mxu0 0.0
    %1210 = vmatpush2.msra.mxu0 0.0
    %1211 = vmatprep.subr.mxu0 0.0
    %1212 = vmatpush2.msra.mxu0 0.0
    %1213 = vmatprep.subr.mxu0 0.0
    %1214 = vmatpush2.msra.mxu0 0.0
    %1215 = vmatprep.subr.mxu0 0.0
    %1216 = vmatpush2.msra.mxu0 0.0
    %1217 = vmatprep.subr.mxu0 0.0
    %1218 = vmatpush2.msra.mxu0 0.0
    %1219 = vmatprep.mubr.f32.mxu0 0.0
    %v1220 = vand.u32 %v706, 4294901760
    %v1221 = vsub.f32 %v706, %v1220
    %1222 = vmatmul.mubr.f32.gmra.mxu0 %v1221
    %v1223 = vpop.f32.mrf.mxu0
    %v1224 = vadd.f32 %v1087, %v1223
    %v1225 = vpop.f32.mrf.mxu0
    %v1226 = vadd.f32 %v1089, %v1225
    %1227 = vdwg.mxu0
    %v1228 = vand.u32 %v738, 4294901760
    %1229 = vmatprep.subr.mxu0 %v1228
    %v1230 = vand.u32 %v737, 4294901760
    %1231 = vmatpush1.msra.mxu0 %v1230
    %v1232 = vand.u32 %v736, 4294901760
    %1233 = vmatprep.subr.mxu0 %v1232
    %v1234 = vand.u32 %v735, 4294901760
    %1235 = vmatpush1.msra.mxu0 %v1234
    %v1236 = vand.u32 %v734, 4294901760
    %1237 = vmatprep.subr.mxu0 %v1236
    %v1238 = vand.u32 %v733, 4294901760
    %1239 = vmatpush1.msra.mxu0 %v1238
    %v1240 = vand.u32 %v732, 4294901760
    %1241 = vmatprep.subr.mxu0 %v1240
    %v1242 = vand.u32 %v731, 4294901760
    %1243 = vmatpush1.msra.mxu0 %v1242
    %v1244 = vand.u32 %v730, 4294901760
    %1245 = vmatprep.subr.mxu0 %v1244
    %v1246 = vand.u32 %v729, 4294901760
    %1247 = vmatpush1.msra.mxu0 %v1246
    %v1248 = vand.u32 %v728, 4294901760
    %1249 = vmatprep.subr.mxu0 %v1248
    %v1250 = vand.u32 %v727, 4294901760
    %1251 = vmatpush1.msra.mxu0 %v1250
    %v1252 = vand.u32 %v726, 4294901760
    %1253 = vmatprep.subr.mxu0 %v1252
    %v1254 = vand.u32 %v725, 4294901760
    %1255 = vmatpush1.msra.mxu0 %v1254
    %v1256 = vand.u32 %v724, 4294901760
    %1257 = vmatprep.subr.mxu0 %v1256
    %v1258 = vand.u32 %v723, 4294901760
    %1259 = vmatpush1.msra.mxu0 %v1258
    %v1260 = vand.u32 %v722, 4294901760
    %1261 = vmatprep.subr.mxu0 %v1260
    %v1262 = vand.u32 %v721, 4294901760
    %1263 = vmatpush1.msra.mxu0 %v1262
    %v1264 = vand.u32 %v720, 4294901760
    %1265 = vmatprep.subr.mxu0 %v1264
    %v1266 = vand.u32 %v719, 4294901760
    %1267 = vmatpush1.msra.mxu0 %v1266
    %v1268 = vand.u32 %v718, 4294901760
    %1269 = vmatprep.subr.mxu0 %v1268
    %v1270 = vand.u32 %v717, 4294901760
    %1271 = vmatpush1.msra.mxu0 %v1270
    %v1272 = vand.u32 %v716, 4294901760
    %1273 = vmatprep.subr.mxu0 %v1272
    %v1274 = vand.u32 %v715, 4294901760
    %1275 = vmatpush1.msra.mxu0 %v1274
    %v1276 = vand.u32 %v714, 4294901760
    %1277 = vmatprep.subr.mxu0 %v1276
    %v1278 = vand.u32 %v713, 4294901760
    %1279 = vmatpush1.msra.mxu0 %v1278
    %v1280 = vand.u32 %v712, 4294901760
    %1281 = vmatprep.subr.mxu0 %v1280
    %v1282 = vand.u32 %v711, 4294901760
    %1283 = vmatpush1.msra.mxu0 %v1282
    %v1284 = vand.u32 %v710, 4294901760
    %1285 = vmatprep.subr.mxu0 %v1284
    %v1286 = vand.u32 %v709, 4294901760
    %1287 = vmatpush1.msra.mxu0 %v1286
    %v1288 = vand.u32 %v708, 4294901760
    %1289 = vmatprep.subr.mxu0 %v1288
    %v1290 = vand.u32 %v707, 4294901760
    %1291 = vmatpush1.msra.mxu0 %v1290
    %1292 = vmatprep.subr.mxu0 0.0
    %1293 = vmatpush2.msra.mxu0 0.0
    %1294 = vmatprep.subr.mxu0 0.0
    %1295 = vmatpush2.msra.mxu0 0.0
    %1296 = vmatprep.subr.mxu0 0.0
    %1297 = vmatpush2.msra.mxu0 0.0
    %1298 = vmatprep.subr.mxu0 0.0
    %1299 = vmatpush2.msra.mxu0 0.0
    %1300 = vmatprep.subr.mxu0 0.0
    %1301 = vmatpush2.msra.mxu0 0.0
    %1302 = vmatprep.subr.mxu0 0.0
    %1303 = vmatpush2.msra.mxu0 0.0
    %1304 = vmatprep.subr.mxu0 0.0
    %1305 = vmatpush2.msra.mxu0 0.0
    %1306 = vmatprep.subr.mxu0 0.0
    %1307 = vmatpush2.msra.mxu0 0.0
    %1308 = vmatprep.subr.mxu0 0.0
    %1309 = vmatpush2.msra.mxu0 0.0
    %1310 = vmatprep.subr.mxu0 0.0
    %1311 = vmatpush2.msra.mxu0 0.0
    %1312 = vmatprep.subr.mxu0 0.0
    %1313 = vmatpush2.msra.mxu0 0.0
    %1314 = vmatprep.subr.mxu0 0.0
    %1315 = vmatpush2.msra.mxu0 0.0
    %1316 = vmatprep.subr.mxu0 0.0
    %1317 = vmatpush2.msra.mxu0 0.0
    %1318 = vmatprep.subr.mxu0 0.0
    %1319 = vmatpush2.msra.mxu0 0.0
    %1320 = vmatprep.subr.mxu0 0.0
    %1321 = vmatpush2.msra.mxu0 0.0
    %1322 = vmatprep.subr.mxu0 0.0
    %1323 = vmatpush2.msra.mxu0 0.0
    %1324 = vmatprep.mubr.f32.mxu0 0.0
    %v1325 = vand.u32 %v706, 4294901760
    %v1326 = vsub.f32 %v706, %v1325
    %v1327 = vand.u32 %v1326, 4294901760
    %1328 = vmatmul.mubr.f32.gmra.mxu0 %v1327
    %v1329 = vpop.f32.mrf.mxu0
    %v1330 = vadd.f32 %v1224, %v1329
    %v1331 = vpop.f32.mrf.mxu0
    %v1332 = vadd.f32 %v1226, %v1331
    %1333 = vdwg.mxu0
    %v1334 = vand.u32 %v738, 4294901760
    %v1335 = vsub.f32 %v738, %v1334
    %v1336 = vand.u32 %v1335, 4294901760
    %1337 = vmatprep.subr.mxu0 %v1336
    %v1338 = vand.u32 %v737, 4294901760
    %v1339 = vsub.f32 %v737, %v1338
    %v1340 = vand.u32 %v1339, 4294901760
    %1341 = vmatpush1.msra.mxu0 %v1340
    %v1342 = vand.u32 %v736, 4294901760
    %v1343 = vsub.f32 %v736, %v1342
    %v1344 = vand.u32 %v1343, 4294901760
    %1345 = vmatprep.subr.mxu0 %v1344
    %v1346 = vand.u32 %v735, 4294901760
    %v1347 = vsub.f32 %v735, %v1346
    %v1348 = vand.u32 %v1347, 4294901760
    %1349 = vmatpush1.msra.mxu0 %v1348
    %v1350 = vand.u32 %v734, 4294901760
    %v1351 = vsub.f32 %v734, %v1350
    %v1352 = vand.u32 %v1351, 4294901760
    %1353 = vmatprep.subr.mxu0 %v1352
    %v1354 = vand.u32 %v733, 4294901760
    %v1355 = vsub.f32 %v733, %v1354
    %v1356 = vand.u32 %v1355, 4294901760
    %1357 = vmatpush1.msra.mxu0 %v1356
    %v1358 = vand.u32 %v732, 4294901760
    %v1359 = vsub.f32 %v732, %v1358
    %v1360 = vand.u32 %v1359, 4294901760
    %1361 = vmatprep.subr.mxu0 %v1360
    %v1362 = vand.u32 %v731, 4294901760
    %v1363 = vsub.f32 %v731, %v1362
    %v1364 = vand.u32 %v1363, 4294901760
    %1365 = vmatpush1.msra.mxu0 %v1364
    %v1366 = vand.u32 %v730, 4294901760
    %v1367 = vsub.f32 %v730, %v1366
    %v1368 = vand.u32 %v1367, 4294901760
    %1369 = vmatprep.subr.mxu0 %v1368
    %v1370 = vand.u32 %v729, 4294901760
    %v1371 = vsub.f32 %v729, %v1370
    %v1372 = vand.u32 %v1371, 4294901760
    %1373 = vmatpush1.msra.mxu0 %v1372
    %v1374 = vand.u32 %v728, 4294901760
    %v1375 = vsub.f32 %v728, %v1374
    %v1376 = vand.u32 %v1375, 4294901760
    %1377 = vmatprep.subr.mxu0 %v1376
    %v1378 = vand.u32 %v727, 4294901760
    %v1379 = vsub.f32 %v727, %v1378
    %v1380 = vand.u32 %v1379, 4294901760
    %1381 = vmatpush1.msra.mxu0 %v1380
    %v1382 = vand.u32 %v726, 4294901760
    %v1383 = vsub.f32 %v726, %v1382
    %v1384 = vand.u32 %v1383, 4294901760
    %1385 = vmatprep.subr.mxu0 %v1384
    %v1386 = vand.u32 %v725, 4294901760
    %v1387 = vsub.f32 %v725, %v1386
    %v1388 = vand.u32 %v1387, 4294901760
    %1389 = vmatpush1.msra.mxu0 %v1388
    %v1390 = vand.u32 %v724, 4294901760
    %v1391 = vsub.f32 %v724, %v1390
    %v1392 = vand.u32 %v1391, 4294901760
    %1393 = vmatprep.subr.mxu0 %v1392
    %v1394 = vand.u32 %v723, 4294901760
    %v1395 = vsub.f32 %v723, %v1394
    %v1396 = vand.u32 %v1395, 4294901760
    %1397 = vmatpush1.msra.mxu0 %v1396
    %v1398 = vand.u32 %v722, 4294901760
    %v1399 = vsub.f32 %v722, %v1398
    %v1400 = vand.u32 %v1399, 4294901760
    %1401 = vmatprep.subr.mxu0 %v1400
    %v1402 = vand.u32 %v721, 4294901760
    %v1403 = vsub.f32 %v721, %v1402
    %v1404 = vand.u32 %v1403, 4294901760
    %1405 = vmatpush1.msra.mxu0 %v1404
    %v1406 = vand.u32 %v720, 4294901760
    %v1407 = vsub.f32 %v720, %v1406
    %v1408 = vand.u32 %v1407, 4294901760
    %1409 = vmatprep.subr.mxu0 %v1408
    %v1410 = vand.u32 %v719, 4294901760
    %v1411 = vsub.f32 %v719, %v1410
    %v1412 = vand.u32 %v1411, 4294901760
    %1413 = vmatpush1.msra.mxu0 %v1412
    %v1414 = vand.u32 %v718, 4294901760
    %v1415 = vsub.f32 %v718, %v1414
    %v1416 = vand.u32 %v1415, 4294901760
    %1417 = vmatprep.subr.mxu0 %v1416
    %v1418 = vand.u32 %v717, 4294901760
    %v1419 = vsub.f32 %v717, %v1418
    %v1420 = vand.u32 %v1419, 4294901760
    %1421 = vmatpush1.msra.mxu0 %v1420
    %v1422 = vand.u32 %v716, 4294901760
    %v1423 = vsub.f32 %v716, %v1422
    %v1424 = vand.u32 %v1423, 4294901760
    %1425 = vmatprep.subr.mxu0 %v1424
    %v1426 = vand.u32 %v715, 4294901760
    %v1427 = vsub.f32 %v715, %v1426
    %v1428 = vand.u32 %v1427, 4294901760
    %1429 = vmatpush1.msra.mxu0 %v1428
    %v1430 = vand.u32 %v714, 4294901760
    %v1431 = vsub.f32 %v714, %v1430
    %v1432 = vand.u32 %v1431, 4294901760
    %1433 = vmatprep.subr.mxu0 %v1432
    %v1434 = vand.u32 %v713, 4294901760
    %v1435 = vsub.f32 %v713, %v1434
    %v1436 = vand.u32 %v1435, 4294901760
    %1437 = vmatpush1.msra.mxu0 %v1436
    %v1438 = vand.u32 %v712, 4294901760
    %v1439 = vsub.f32 %v712, %v1438
    %v1440 = vand.u32 %v1439, 4294901760
    %1441 = vmatprep.subr.mxu0 %v1440
    %v1442 = vand.u32 %v711, 4294901760
    %v1443 = vsub.f32 %v711, %v1442
    %v1444 = vand.u32 %v1443, 4294901760
    %1445 = vmatpush1.msra.mxu0 %v1444
    %v1446 = vand.u32 %v710, 4294901760
    %v1447 = vsub.f32 %v710, %v1446
    %v1448 = vand.u32 %v1447, 4294901760
    %1449 = vmatprep.subr.mxu0 %v1448
    %v1450 = vand.u32 %v709, 4294901760
    %v1451 = vsub.f32 %v709, %v1450
    %v1452 = vand.u32 %v1451, 4294901760
    %1453 = vmatpush1.msra.mxu0 %v1452
    %v1454 = vand.u32 %v708, 4294901760
    %v1455 = vsub.f32 %v708, %v1454
    %v1456 = vand.u32 %v1455, 4294901760
    %1457 = vmatprep.subr.mxu0 %v1456
    %v1458 = vand.u32 %v707, 4294901760
    %v1459 = vsub.f32 %v707, %v1458
    %v1460 = vand.u32 %v1459, 4294901760
    %1461 = vmatpush1.msra.mxu0 %v1460
    %1462 = vmatprep.subr.mxu0 0.0
    %1463 = vmatpush2.msra.mxu0 0.0
    %1464 = vmatprep.subr.mxu0 0.0
    %1465 = vmatpush2.msra.mxu0 0.0
    %1466 = vmatprep.subr.mxu0 0.0
    %1467 = vmatpush2.msra.mxu0 0.0
    %1468 = vmatprep.subr.mxu0 0.0
    %1469 = vmatpush2.msra.mxu0 0.0
    %1470 = vmatprep.subr.mxu0 0.0
    %1471 = vmatpush2.msra.mxu0 0.0
    %1472 = vmatprep.subr.mxu0 0.0
    %1473 = vmatpush2.msra.mxu0 0.0
    %1474 = vmatprep.subr.mxu0 0.0
    %1475 = vmatpush2.msra.mxu0 0.0
    %1476 = vmatprep.subr.mxu0 0.0
    %1477 = vmatpush2.msra.mxu0 0.0
    %1478 = vmatprep.subr.mxu0 0.0
    %1479 = vmatpush2.msra.mxu0 0.0
    %1480 = vmatprep.subr.mxu0 0.0
    %1481 = vmatpush2.msra.mxu0 0.0
    %1482 = vmatprep.subr.mxu0 0.0
    %1483 = vmatpush2.msra.mxu0 0.0
    %1484 = vmatprep.subr.mxu0 0.0
    %1485 = vmatpush2.msra.mxu0 0.0
    %1486 = vmatprep.subr.mxu0 0.0
    %1487 = vmatpush2.msra.mxu0 0.0
    %1488 = vmatprep.subr.mxu0 0.0
    %1489 = vmatpush2.msra.mxu0 0.0
    %1490 = vmatprep.subr.mxu0 0.0
    %1491 = vmatpush2.msra.mxu0 0.0
    %1492 = vmatprep.subr.mxu0 0.0
    %1493 = vmatpush2.msra.mxu0 0.0
    %1494 = vmatprep.mubr.f32.mxu0 0.0
    %v1495 = vand.u32 %v706, 4294901760
    %1496 = vmatmul.mubr.f32.gmra.mxu0 %v1495
    %v1497 = vpop.f32.mrf.mxu0
    %v1498 = vadd.f32 %v1330, %v1497
    %v1499 = vpop.f32.mrf.mxu0
    %v1500 = vadd.f32 %v1332, %v1499
    %1501 = vdwg.mxu0
    %v1502 = vand.u32 %v738, 4294901760
    %1503 = vmatprep.subr.mxu0 %v1502
    %v1504 = vand.u32 %v737, 4294901760
    %1505 = vmatpush1.msra.mxu0 %v1504
    %v1506 = vand.u32 %v736, 4294901760
    %1507 = vmatprep.subr.mxu0 %v1506
    %v1508 = vand.u32 %v735, 4294901760
    %1509 = vmatpush1.msra.mxu0 %v1508
    %v1510 = vand.u32 %v734, 4294901760
    %1511 = vmatprep.subr.mxu0 %v1510
    %v1512 = vand.u32 %v733, 4294901760
    %1513 = vmatpush1.msra.mxu0 %v1512
    %v1514 = vand.u32 %v732, 4294901760
    %1515 = vmatprep.subr.mxu0 %v1514
    %v1516 = vand.u32 %v731, 4294901760
    %1517 = vmatpush1.msra.mxu0 %v1516
    %v1518 = vand.u32 %v730, 4294901760
    %1519 = vmatprep.subr.mxu0 %v1518
    %v1520 = vand.u32 %v729, 4294901760
    %1521 = vmatpush1.msra.mxu0 %v1520
    %v1522 = vand.u32 %v728, 4294901760
    %1523 = vmatprep.subr.mxu0 %v1522
    %v1524 = vand.u32 %v727, 4294901760
    %1525 = vmatpush1.msra.mxu0 %v1524
    %v1526 = vand.u32 %v726, 4294901760
    %1527 = vmatprep.subr.mxu0 %v1526
    %v1528 = vand.u32 %v725, 4294901760
    %1529 = vmatpush1.msra.mxu0 %v1528
    %v1530 = vand.u32 %v724, 4294901760
    %1531 = vmatprep.subr.mxu0 %v1530
    %v1532 = vand.u32 %v723, 4294901760
    %1533 = vmatpush1.msra.mxu0 %v1532
    %v1534 = vand.u32 %v722, 4294901760
    %1535 = vmatprep.subr.mxu0 %v1534
    %v1536 = vand.u32 %v721, 4294901760
    %1537 = vmatpush1.msra.mxu0 %v1536
    %v1538 = vand.u32 %v720, 4294901760
    %1539 = vmatprep.subr.mxu0 %v1538
    %v1540 = vand.u32 %v719, 4294901760
    %1541 = vmatpush1.msra.mxu0 %v1540
    %v1542 = vand.u32 %v718, 4294901760
    %1543 = vmatprep.subr.mxu0 %v1542
    %v1544 = vand.u32 %v717, 4294901760
    %1545 = vmatpush1.msra.mxu0 %v1544
    %v1546 = vand.u32 %v716, 4294901760
    %1547 = vmatprep.subr.mxu0 %v1546
    %v1548 = vand.u32 %v715, 4294901760
    %1549 = vmatpush1.msra.mxu0 %v1548
    %v1550 = vand.u32 %v714, 4294901760
    %1551 = vmatprep.subr.mxu0 %v1550
    %v1552 = vand.u32 %v713, 4294901760
    %1553 = vmatpush1.msra.mxu0 %v1552
    %v1554 = vand.u32 %v712, 4294901760
    %1555 = vmatprep.subr.mxu0 %v1554
    %v1556 = vand.u32 %v711, 4294901760
    %1557 = vmatpush1.msra.mxu0 %v1556
    %v1558 = vand.u32 %v710, 4294901760
    %1559 = vmatprep.subr.mxu0 %v1558
    %v1560 = vand.u32 %v709, 4294901760
    %1561 = vmatpush1.msra.mxu0 %v1560
    %v1562 = vand.u32 %v708, 4294901760
    %1563 = vmatprep.subr.mxu0 %v1562
    %v1564 = vand.u32 %v707, 4294901760
    %1565 = vmatpush1.msra.mxu0 %v1564
    %1566 = vmatprep.subr.mxu0 0.0
    %1567 = vmatpush2.msra.mxu0 0.0
    %1568 = vmatprep.subr.mxu0 0.0
    %1569 = vmatpush2.msra.mxu0 0.0
    %1570 = vmatprep.subr.mxu0 0.0
    %1571 = vmatpush2.msra.mxu0 0.0
    %1572 = vmatprep.subr.mxu0 0.0
    %1573 = vmatpush2.msra.mxu0 0.0
    %1574 = vmatprep.subr.mxu0 0.0
    %1575 = vmatpush2.msra.mxu0 0.0
    %1576 = vmatprep.subr.mxu0 0.0
    %1577 = vmatpush2.msra.mxu0 0.0
    %1578 = vmatprep.subr.mxu0 0.0
    %1579 = vmatpush2.msra.mxu0 0.0
    %1580 = vmatprep.subr.mxu0 0.0
    %1581 = vmatpush2.msra.mxu0 0.0
    %1582 = vmatprep.subr.mxu0 0.0
    %1583 = vmatpush2.msra.mxu0 0.0
    %1584 = vmatprep.subr.mxu0 0.0
    %1585 = vmatpush2.msra.mxu0 0.0
    %1586 = vmatprep.subr.mxu0 0.0
    %1587 = vmatpush2.msra.mxu0 0.0
    %1588 = vmatprep.subr.mxu0 0.0
    %1589 = vmatpush2.msra.mxu0 0.0
    %1590 = vmatprep.subr.mxu0 0.0
    %1591 = vmatpush2.msra.mxu0 0.0
    %1592 = vmatprep.subr.mxu0 0.0
    %1593 = vmatpush2.msra.mxu0 0.0
    %1594 = vmatprep.subr.mxu0 0.0
    %1595 = vmatpush2.msra.mxu0 0.0
    %1596 = vmatprep.subr.mxu0 0.0
    %1597 = vmatpush2.msra.mxu0 0.0
    %1598 = vmatprep.mubr.f32.mxu0 0.0
    %v1599 = vand.u32 %v706, 4294901760
    %1600 = vmatmul.mubr.f32.gmra.mxu0 %v1599
    %v1601 = vpop.f32.mrf.mxu0
    %v1602 = vadd.f32 %v1498, %v1601
    %v1603 = vpop.f32.mrf.mxu0
    %v1604 = vadd.f32 %v1500, %v1603
    %1605 = vdwg.mxu0
    %v1606 = vmax.f32 %v1602, 0.0
    %v1607 = vmax.f32 %v1604, 0.0
    %v1608 = vld [vmem:[%s5] sm:$0xff]
    %v1609 = vld [vmem:[%s5 + $0x8] sm:$0xff]
    %v1610 = vld [vmem:[%s5 + $0x10] sm:$0xff]
    %v1611 = vld [vmem:[%s5 + $0x18] sm:$0xff]
    %v1612 = vld [vmem:[%s5 + $0x20] sm:$0xff]
    %v1613 = vld [vmem:[%s5 + $0x28] sm:$0xff]
    %v1614 = vld [vmem:[%s5 + $0x30] sm:$0xff]
    %v1615 = vld [vmem:[%s5 + $0x38] sm:$0xff]
    %v1616 = vld [vmem:[%s5 + $0x40] sm:$0xff]
    %v1617 = vld [vmem:[%s5 + $0x48] sm:$0xff]
    %v1618 = vld [vmem:[%s5 + $0x50] sm:$0xff]
    %v1619 = vld [vmem:[%s5 + $0x58] sm:$0xff]
    %v1620 = vld [vmem:[%s5 + $0x60] sm:$0xff]
    %v1621 = vld [vmem:[%s5 + $0x68] sm:$0xff]
    %v1622 = vld [vmem:[%s5 + $0x70] sm:$0xff]
    %v1623 = vld [vmem:[%s5 + $0x78] sm:$0xff]
    %v1624 = vld [vmem:[%s5 + $0x80] sm:$0xff]
    %v1625 = vld [vmem:[%s5 + $0x88] sm:$0xff]
    %v1626 = vld [vmem:[%s5 + $0x90] sm:$0xff]
    %v1627 = vld [vmem:[%s5 + $0x98] sm:$0xff]
    %v1628 = vld [vmem:[%s5 + $0xa0] sm:$0xff]
    %v1629 = vld [vmem:[%s5 + $0xa8] sm:$0xff]
    %v1630 = vld [vmem:[%s5 + $0xb0] sm:$0xff]
    %v1631 = vld [vmem:[%s5 + $0xb8] sm:$0xff]
    %v1632 = vld [vmem:[%s5 + $0xc0] sm:$0xff]
    %v1633 = vld [vmem:[%s5 + $0xc8] sm:$0xff]
    %v1634 = vld [vmem:[%s5 + $0xd0] sm:$0xff]
    %v1635 = vld [vmem:[%s5 + $0xd8] sm:$0xff]
    %v1636 = vld [vmem:[%s5 + $0xe0] sm:$0xff]
    %v1637 = vld [vmem:[%s5 + $0xe8] sm:$0xff]
    %v1638 = vld [vmem:[%s5 + $0xf0] sm:$0xff]
    %v1639 = vld [vmem:[%s5 + $0xf8] sm:$0xff]
    %v1640 = vld [vmem:[%s5 + $0x100] sm:$0xff]
    %v1641 = vld [vmem:[%s5 + $0x108] sm:$0xff]
    %v1642 = vld [vmem:[%s5 + $0x110] sm:$0xff]
    %v1643 = vld [vmem:[%s5 + $0x118] sm:$0xff]
    %v1644 = vld [vmem:[%s5 + $0x120] sm:$0xff]
    %v1645 = vld [vmem:[%s5 + $0x128] sm:$0xff]
    %v1646 = vld [vmem:[%s5 + $0x130] sm:$0xff]
    %v1647 = vld [vmem:[%s5 + $0x138] sm:$0xff]
    %v1648 = vld [vmem:[%s5 + $0x140] sm:$0xff]
    %v1649 = vld [vmem:[%s5 + $0x148] sm:$0xff]
    %v1650 = vld [vmem:[%s5 + $0x150] sm:$0xff]
    %v1651 = vld [vmem:[%s5 + $0x158] sm:$0xff]
    %v1652 = vld [vmem:[%s5 + $0x160] sm:$0xff]
    %v1653 = vld [vmem:[%s5 + $0x168] sm:$0xff]
    %v1654 = vld [vmem:[%s5 + $0x170] sm:$0xff]
    %v1655 = vld [vmem:[%s5 + $0x178] sm:$0xff]
    %v1656 = vld [vmem:[%s6] sm:$0x3]
    %v1658 = vlaneseq
    %v1659 = vshrl.u32 %v1658, 7
    %v1660 = vsub.s32 0, %v1659
    %v1661 = vrot.slane %v1656, %v1660
    %v1662 = vlaneseq
    %v1663 = vshrl.u32 %v1662, 7
    %v1664 = vsub.s32 1, %v1663
    %v1665 = vrot.slane %v1656, %v1664
    %vm1668 = vcmask 523264
    %v1670 = vsel %vm1668, %v1607, 0
    %v1672 = vand.u32 %v1639, 4294901760
    %1673 = vmatprep.subr.mxu0 %v1672
    %v1674 = vand.u32 %v1638, 4294901760
    %1675 = vmatpush1.msra.mxu0 %v1674
    %v1676 = vand.u32 %v1637, 4294901760
    %1677 = vmatprep.subr.mxu0 %v1676
    %v1678 = vand.u32 %v1636, 4294901760
    %1679 = vmatpush1.msra.mxu0 %v1678
    %v1680 = vand.u32 %v1635, 4294901760
    %1681 = vmatprep.subr.mxu0 %v1680
    %v1682 = vand.u32 %v1634, 4294901760
    %1683 = vmatpush1.msra.mxu0 %v1682
    %v1684 = vand.u32 %v1633, 4294901760
    %1685 = vmatprep.subr.mxu0 %v1684
    %v1686 = vand.u32 %v1632, 4294901760
    %1687 = vmatpush1.msra.mxu0 %v1686
    %v1688 = vand.u32 %v1631, 4294901760
    %1689 = vmatprep.subr.mxu0 %v1688
    %v1690 = vand.u32 %v1630, 4294901760
    %1691 = vmatpush1.msra.mxu0 %v1690
    %v1692 = vand.u32 %v1629, 4294901760
    %1693 = vmatprep.subr.mxu0 %v1692
    %v1694 = vand.u32 %v1628, 4294901760
    %1695 = vmatpush1.msra.mxu0 %v1694
    %v1696 = vand.u32 %v1627, 4294901760
    %1697 = vmatprep.subr.mxu0 %v1696
    %v1698 = vand.u32 %v1626, 4294901760
    %1699 = vmatpush1.msra.mxu0 %v1698
    %v1700 = vand.u32 %v1625, 4294901760
    %1701 = vmatprep.subr.mxu0 %v1700
    %v1702 = vand.u32 %v1624, 4294901760
    %1703 = vmatpush1.msra.mxu0 %v1702
    %v1704 = vand.u32 %v1623, 4294901760
    %1705 = vmatprep.subr.mxu0 %v1704
    %v1706 = vand.u32 %v1622, 4294901760
    %1707 = vmatpush1.msra.mxu0 %v1706
    %v1708 = vand.u32 %v1621, 4294901760
    %1709 = vmatprep.subr.mxu0 %v1708
    %v1710 = vand.u32 %v1620, 4294901760
    %1711 = vmatpush1.msra.mxu0 %v1710
    %v1712 = vand.u32 %v1619, 4294901760
    %1713 = vmatprep.subr.mxu0 %v1712
    %v1714 = vand.u32 %v1618, 4294901760
    %1715 = vmatpush1.msra.mxu0 %v1714
    %v1716 = vand.u32 %v1617, 4294901760
    %1717 = vmatprep.subr.mxu0 %v1716
    %v1718 = vand.u32 %v1616, 4294901760
    %1719 = vmatpush1.msra.mxu0 %v1718
    %v1720 = vand.u32 %v1615, 4294901760
    %1721 = vmatprep.subr.mxu0 %v1720
    %v1722 = vand.u32 %v1614, 4294901760
    %1723 = vmatpush1.msra.mxu0 %v1722
    %v1724 = vand.u32 %v1613, 4294901760
    %1725 = vmatprep.subr.mxu0 %v1724
    %v1726 = vand.u32 %v1612, 4294901760
    %1727 = vmatpush1.msra.mxu0 %v1726
    %v1728 = vand.u32 %v1611, 4294901760
    %1729 = vmatprep.subr.mxu0 %v1728
    %v1730 = vand.u32 %v1610, 4294901760
    %1731 = vmatpush1.msra.mxu0 %v1730
    %v1732 = vand.u32 %v1609, 4294901760
    %1733 = vmatprep.subr.mxu0 %v1732
    %v1734 = vand.u32 %v1608, 4294901760
    %1735 = vmatpush1.msra.mxu0 %v1734
    %1736 = vmatprep.subr.mxu0 0.0
    %1737 = vmatpush2.msra.mxu0 0.0
    %1738 = vmatprep.subr.mxu0 0.0
    %1739 = vmatpush2.msra.mxu0 0.0
    %1740 = vmatprep.subr.mxu0 0.0
    %1741 = vmatpush2.msra.mxu0 0.0
    %1742 = vmatprep.subr.mxu0 0.0
    %1743 = vmatpush2.msra.mxu0 0.0
    %1744 = vmatprep.subr.mxu0 0.0
    %1745 = vmatpush2.msra.mxu0 0.0
    %1746 = vmatprep.subr.mxu0 0.0
    %1747 = vmatpush2.msra.mxu0 0.0
    %1748 = vmatprep.subr.mxu0 0.0
    %1749 = vmatpush2.msra.mxu0 0.0
    %1750 = vmatprep.subr.mxu0 0.0
    %1751 = vmatpush2.msra.mxu0 0.0
    %v1752 = vand.u32 %v1655, 4294901760
    %1753 = vmatprep.subr.mxu0 %v1752
    %v1754 = vand.u32 %v1654, 4294901760
    %1755 = vmatpush2.msra.mxu0 %v1754
    %v1756 = vand.u32 %v1653, 4294901760
    %1757 = vmatprep.subr.mxu0 %v1756
    %v1758 = vand.u32 %v1652, 4294901760
    %1759 = vmatpush2.msra.mxu0 %v1758
    %v1760 = vand.u32 %v1651, 4294901760
    %1761 = vmatprep.subr.mxu0 %v1760
    %v1762 = vand.u32 %v1650, 4294901760
    %1763 = vmatpush2.msra.mxu0 %v1762
    %v1764 = vand.u32 %v1649, 4294901760
    %1765 = vmatprep.subr.mxu0 %v1764
    %v1766 = vand.u32 %v1648, 4294901760
    %1767 = vmatpush2.msra.mxu0 %v1766
    %v1768 = vand.u32 %v1647, 4294901760
    %1769 = vmatprep.subr.mxu0 %v1768
    %v1770 = vand.u32 %v1646, 4294901760
    %1771 = vmatpush2.msra.mxu0 %v1770
    %v1772 = vand.u32 %v1645, 4294901760
    %1773 = vmatprep.subr.mxu0 %v1772
    %v1774 = vand.u32 %v1644, 4294901760
    %1775 = vmatpush2.msra.mxu0 %v1774
    %v1776 = vand.u32 %v1643, 4294901760
    %1777 = vmatprep.subr.mxu0 %v1776
    %v1778 = vand.u32 %v1642, 4294901760
    %1779 = vmatpush2.msra.mxu0 %v1778
    %v1780 = vand.u32 %v1641, 4294901760
    %1781 = vmatprep.subr.mxu0 %v1780
    %v1782 = vand.u32 %v1640, 4294901760
    %1783 = vmatpush2.msra.mxu0 %v1782
    %v1784 = vand.u32 %v1670, 4294901760
    %v1785 = vsub.f32 %v1670, %v1784
    %v1786 = vand.u32 %v1785, 4294901760
    %v1787 = vsub.f32 %v1785, %v1786
    %v1788 = vand.u32 %v1787, 4294901760
    %1789 = vmatprep.mubr.f32.mxu0 %v1788
    %v1790 = vand.u32 %v1606, 4294901760
    %v1791 = vsub.f32 %v1606, %v1790
    %v1792 = vand.u32 %v1791, 4294901760
    %v1793 = vsub.f32 %v1791, %v1792
    %v1794 = vand.u32 %v1793, 4294901760
    %1795 = vmatmul.mubr.f32.gmra.mxu0 %v1794
    %v1796 = vpop.f32.mrf.mxu0
    %v1797 = vadd.f32 %v1661, %v1796
    %v1798 = vpop.f32.mrf.mxu0
    %v1799 = vadd.f32 %v1665, %v1798
    %1800 = vdwg.mxu0
    %v1801 = vand.u32 %v1639, 4294901760
    %v1802 = vsub.f32 %v1639, %v1801
    %v1803 = vand.u32 %v1802, 4294901760
    %v1804 = vsub.f32 %v1802, %v1803
    %v1805 = vand.u32 %v1804, 4294901760
    %1806 = vmatprep.subr.mxu0 %v1805
    %v1807 = vand.u32 %v1638, 4294901760
    %v1808 = vsub.f32 %v1638, %v1807
    %v1809 = vand.u32 %v1808, 4294901760
    %v1810 = vsub.f32 %v1808, %v1809
    %v1811 = vand.u32 %v1810, 4294901760
    %1812 = vmatpush1.msra.mxu0 %v1811
    %v1813 = vand.u32 %v1637, 4294901760
    %v1814 = vsub.f32 %v1637, %v1813
    %v1815 = vand.u32 %v1814, 4294901760
    %v1816 = vsub.f32 %v1814, %v1815
    %v1817 = vand.u32 %v1816, 4294901760
    %1818 = vmatprep.subr.mxu0 %v1817
    %v1819 = vand.u32 %v1636, 4294901760
    %v1820 = vsub.f32 %v1636, %v1819
    %v1821 = vand.u32 %v1820, 4294901760
    %v1822 = vsub.f32 %v1820, %v1821
    %v1823 = vand.u32 %v1822, 4294901760
    %1824 = vmatpush1.msra.mxu0 %v1823
    %v1825 = vand.u32 %v1635, 4294901760
    %v1826 = vsub.f32 %v1635, %v1825
    %v1827 = vand.u32 %v1826, 4294901760
    %v1828 = vsub.f32 %v1826, %v1827
    %v1829 = vand.u32 %v1828, 4294901760
    %1830 = vmatprep.subr.mxu0 %v1829
    %v1831 = vand.u32 %v1634, 4294901760
    %v1832 = vsub.f32 %v1634, %v1831
    %v1833 = vand.u32 %v1832, 4294901760
    %v1834 = vsub.f32 %v1832, %v1833
    %v1835 = vand.u32 %v1834, 4294901760
    %1836 = vmatpush1.msra.mxu0 %v1835
    %v1837 = vand.u32 %v1633, 4294901760
    %v1838 = vsub.f32 %v1633, %v1837
    %v1839 = vand.u32 %v1838, 4294901760
    %v1840 = vsub.f32 %v1838, %v1839
    %v1841 = vand.u32 %v1840, 4294901760
    %1842 = vmatprep.subr.mxu0 %v1841
    %v1843 = vand.u32 %v1632, 4294901760
    %v1844 = vsub.f32 %v1632, %v1843
    %v1845 = vand.u32 %v1844, 4294901760
    %v1846 = vsub.f32 %v1844, %v1845
    %v1847 = vand.u32 %v1846, 4294901760
    %1848 = vmatpush1.msra.mxu0 %v1847
    %v1849 = vand.u32 %v1631, 4294901760
    %v1850 = vsub.f32 %v1631, %v1849
    %v1851 = vand.u32 %v1850, 4294901760
    %v1852 = vsub.f32 %v1850, %v1851
    %v1853 = vand.u32 %v1852, 4294901760
    %1854 = vmatprep.subr.mxu0 %v1853
    %v1855 = vand.u32 %v1630, 4294901760
    %v1856 = vsub.f32 %v1630, %v1855
    %v1857 = vand.u32 %v1856, 4294901760
    %v1858 = vsub.f32 %v1856, %v1857
    %v1859 = vand.u32 %v1858, 4294901760
    %1860 = vmatpush1.msra.mxu0 %v1859
    %v1861 = vand.u32 %v1629, 4294901760
    %v1862 = vsub.f32 %v1629, %v1861
    %v1863 = vand.u32 %v1862, 4294901760
    %v1864 = vsub.f32 %v1862, %v1863
    %v1865 = vand.u32 %v1864, 4294901760
    %1866 = vmatprep.subr.mxu0 %v1865
    %v1867 = vand.u32 %v1628, 4294901760
    %v1868 = vsub.f32 %v1628, %v1867
    %v1869 = vand.u32 %v1868, 4294901760
    %v1870 = vsub.f32 %v1868, %v1869
    %v1871 = vand.u32 %v1870, 4294901760
    %1872 = vmatpush1.msra.mxu0 %v1871
    %v1873 = vand.u32 %v1627, 4294901760
    %v1874 = vsub.f32 %v1627, %v1873
    %v1875 = vand.u32 %v1874, 4294901760
    %v1876 = vsub.f32 %v1874, %v1875
    %v1877 = vand.u32 %v1876, 4294901760
    %1878 = vmatprep.subr.mxu0 %v1877
    %v1879 = vand.u32 %v1626, 4294901760
    %v1880 = vsub.f32 %v1626, %v1879
    %v1881 = vand.u32 %v1880, 4294901760
    %v1882 = vsub.f32 %v1880, %v1881
    %v1883 = vand.u32 %v1882, 4294901760
    %1884 = vmatpush1.msra.mxu0 %v1883
    %v1885 = vand.u32 %v1625, 4294901760
    %v1886 = vsub.f32 %v1625, %v1885
    %v1887 = vand.u32 %v1886, 4294901760
    %v1888 = vsub.f32 %v1886, %v1887
    %v1889 = vand.u32 %v1888, 4294901760
    %1890 = vmatprep.subr.mxu0 %v1889
    %v1891 = vand.u32 %v1624, 4294901760
    %v1892 = vsub.f32 %v1624, %v1891
    %v1893 = vand.u32 %v1892, 4294901760
    %v1894 = vsub.f32 %v1892, %v1893
    %v1895 = vand.u32 %v1894, 4294901760
    %1896 = vmatpush1.msra.mxu0 %v1895
    %v1897 = vand.u32 %v1623, 4294901760
    %v1898 = vsub.f32 %v1623, %v1897
    %v1899 = vand.u32 %v1898, 4294901760
    %v1900 = vsub.f32 %v1898, %v1899
    %v1901 = vand.u32 %v1900, 4294901760
    %1902 = vmatprep.subr.mxu0 %v1901
    %v1903 = vand.u32 %v1622, 4294901760
    %v1904 = vsub.f32 %v1622, %v1903
    %v1905 = vand.u32 %v1904, 4294901760
    %v1906 = vsub.f32 %v1904, %v1905
    %v1907 = vand.u32 %v1906, 4294901760
    %1908 = vmatpush1.msra.mxu0 %v1907
    %v1909 = vand.u32 %v1621, 4294901760
    %v1910 = vsub.f32 %v1621, %v1909
    %v1911 = vand.u32 %v1910, 4294901760
    %v1912 = vsub.f32 %v1910, %v1911
    %v1913 = vand.u32 %v1912, 4294901760
    %1914 = vmatprep.subr.mxu0 %v1913
    %v1915 = vand.u32 %v1620, 4294901760
    %v1916 = vsub.f32 %v1620, %v1915
    %v1917 = vand.u32 %v1916, 4294901760
    %v1918 = vsub.f32 %v1916, %v1917
    %v1919 = vand.u32 %v1918, 4294901760
    %1920 = vmatpush1.msra.mxu0 %v1919
    %v1921 = vand.u32 %v1619, 4294901760
    %v1922 = vsub.f32 %v1619, %v1921
    %v1923 = vand.u32 %v1922, 4294901760
    %v1924 = vsub.f32 %v1922, %v1923
    %v1925 = vand.u32 %v1924, 4294901760
    %1926 = vmatprep.subr.mxu0 %v1925
    %v1927 = vand.u32 %v1618, 4294901760
    %v1928 = vsub.f32 %v1618, %v1927
    %v1929 = vand.u32 %v1928, 4294901760
    %v1930 = vsub.f32 %v1928, %v1929
    %v1931 = vand.u32 %v1930, 4294901760
    %1932 = vmatpush1.msra.mxu0 %v1931
    %v1933 = vand.u32 %v1617, 4294901760
    %v1934 = vsub.f32 %v1617, %v1933
    %v1935 = vand.u32 %v1934, 4294901760
    %v1936 = vsub.f32 %v1934, %v1935
    %v1937 = vand.u32 %v1936, 4294901760
    %1938 = vmatprep.subr.mxu0 %v1937
    %v1939 = vand.u32 %v1616, 4294901760
    %v1940 = vsub.f32 %v1616, %v1939
    %v1941 = vand.u32 %v1940, 4294901760
    %v1942 = vsub.f32 %v1940, %v1941
    %v1943 = vand.u32 %v1942, 4294901760
    %1944 = vmatpush1.msra.mxu0 %v1943
    %v1945 = vand.u32 %v1615, 4294901760
    %v1946 = vsub.f32 %v1615, %v1945
    %v1947 = vand.u32 %v1946, 4294901760
    %v1948 = vsub.f32 %v1946, %v1947
    %v1949 = vand.u32 %v1948, 4294901760
    %1950 = vmatprep.subr.mxu0 %v1949
    %v1951 = vand.u32 %v1614, 4294901760
    %v1952 = vsub.f32 %v1614, %v1951
    %v1953 = vand.u32 %v1952, 4294901760
    %v1954 = vsub.f32 %v1952, %v1953
    %v1955 = vand.u32 %v1954, 4294901760
    %1956 = vmatpush1.msra.mxu0 %v1955
    %v1957 = vand.u32 %v1613, 4294901760
    %v1958 = vsub.f32 %v1613, %v1957
    %v1959 = vand.u32 %v1958, 4294901760
    %v1960 = vsub.f32 %v1958, %v1959
    %v1961 = vand.u32 %v1960, 4294901760
    %1962 = vmatprep.subr.mxu0 %v1961
    %v1963 = vand.u32 %v1612, 4294901760
    %v1964 = vsub.f32 %v1612, %v1963
    %v1965 = vand.u32 %v1964, 4294901760
    %v1966 = vsub.f32 %v1964, %v1965
    %v1967 = vand.u32 %v1966, 4294901760
    %1968 = vmatpush1.msra.mxu0 %v1967
    %v1969 = vand.u32 %v1611, 4294901760
    %v1970 = vsub.f32 %v1611, %v1969
    %v1971 = vand.u32 %v1970, 4294901760
    %v1972 = vsub.f32 %v1970, %v1971
    %v1973 = vand.u32 %v1972, 4294901760
    %1974 = vmatprep.subr.mxu0 %v1973
    %v1975 = vand.u32 %v1610, 4294901760
    %v1976 = vsub.f32 %v1610, %v1975
    %v1977 = vand.u32 %v1976, 4294901760
    %v1978 = vsub.f32 %v1976, %v1977
    %v1979 = vand.u32 %v1978, 4294901760
    %1980 = vmatpush1.msra.mxu0 %v1979
    %v1981 = vand.u32 %v1609, 4294901760
    %v1982 = vsub.f32 %v1609, %v1981
    %v1983 = vand.u32 %v1982, 4294901760
    %v1984 = vsub.f32 %v1982, %v1983
    %v1985 = vand.u32 %v1984, 4294901760
    %1986 = vmatprep.subr.mxu0 %v1985
    %v1987 = vand.u32 %v1608, 4294901760
    %v1988 = vsub.f32 %v1608, %v1987
    %v1989 = vand.u32 %v1988, 4294901760
    %v1990 = vsub.f32 %v1988, %v1989
    %v1991 = vand.u32 %v1990, 4294901760
    %1992 = vmatpush1.msra.mxu0 %v1991
    %1993 = vmatprep.subr.mxu0 0.0
    %1994 = vmatpush2.msra.mxu0 0.0
    %1995 = vmatprep.subr.mxu0 0.0
    %1996 = vmatpush2.msra.mxu0 0.0
    %1997 = vmatprep.subr.mxu0 0.0
    %1998 = vmatpush2.msra.mxu0 0.0
    %1999 = vmatprep.subr.mxu0 0.0
    %2000 = vmatpush2.msra.mxu0 0.0
    %2001 = vmatprep.subr.mxu0 0.0
    %2002 = vmatpush2.msra.mxu0 0.0
    %2003 = vmatprep.subr.mxu0 0.0
    %2004 = vmatpush2.msra.mxu0 0.0
    %2005 = vmatprep.subr.mxu0 0.0
    %2006 = vmatpush2.msra.mxu0 0.0
    %2007 = vmatprep.subr.mxu0 0.0
    %2008 = vmatpush2.msra.mxu0 0.0
    %v2009 = vand.u32 %v1655, 4294901760
    %v2010 = vsub.f32 %v1655, %v2009
    %v2011 = vand.u32 %v2010, 4294901760
    %v2012 = vsub.f32 %v2010, %v2011
    %v2013 = vand.u32 %v2012, 4294901760
    %2014 = vmatprep.subr.mxu0 %v2013
    %v2015 = vand.u32 %v1654, 4294901760
    %v2016 = vsub.f32 %v1654, %v2015
    %v2017 = vand.u32 %v2016, 4294901760
    %v2018 = vsub.f32 %v2016, %v2017
    %v2019 = vand.u32 %v2018, 4294901760
    %2020 = vmatpush2.msra.mxu0 %v2019
    %v2021 = vand.u32 %v1653, 4294901760
    %v2022 = vsub.f32 %v1653, %v2021
    %v2023 = vand.u32 %v2022, 4294901760
    %v2024 = vsub.f32 %v2022, %v2023
    %v2025 = vand.u32 %v2024, 4294901760
    %2026 = vmatprep.subr.mxu0 %v2025
    %v2027 = vand.u32 %v1652, 4294901760
    %v2028 = vsub.f32 %v1652, %v2027
    %v2029 = vand.u32 %v2028, 4294901760
    %v2030 = vsub.f32 %v2028, %v2029
    %v2031 = vand.u32 %v2030, 4294901760
    %2032 = vmatpush2.msra.mxu0 %v2031
    %v2033 = vand.u32 %v1651, 4294901760
    %v2034 = vsub.f32 %v1651, %v2033
    %v2035 = vand.u32 %v2034, 4294901760
    %v2036 = vsub.f32 %v2034, %v2035
    %v2037 = vand.u32 %v2036, 4294901760
    %2038 = vmatprep.subr.mxu0 %v2037
    %v2039 = vand.u32 %v1650, 4294901760
    %v2040 = vsub.f32 %v1650, %v2039
    %v2041 = vand.u32 %v2040, 4294901760
    %v2042 = vsub.f32 %v2040, %v2041
    %v2043 = vand.u32 %v2042, 4294901760
    %2044 = vmatpush2.msra.mxu0 %v2043
    %v2045 = vand.u32 %v1649, 4294901760
    %v2046 = vsub.f32 %v1649, %v2045
    %v2047 = vand.u32 %v2046, 4294901760
    %v2048 = vsub.f32 %v2046, %v2047
    %v2049 = vand.u32 %v2048, 4294901760
    %2050 = vmatprep.subr.mxu0 %v2049
    %v2051 = vand.u32 %v1648, 4294901760
    %v2052 = vsub.f32 %v1648, %v2051
    %v2053 = vand.u32 %v2052, 4294901760
    %v2054 = vsub.f32 %v2052, %v2053
    %v2055 = vand.u32 %v2054, 4294901760
    %2056 = vmatpush2.msra.mxu0 %v2055
    %v2057 = vand.u32 %v1647, 4294901760
    %v2058 = vsub.f32 %v1647, %v2057
    %v2059 = vand.u32 %v2058, 4294901760
    %v2060 = vsub.f32 %v2058, %v2059
    %v2061 = vand.u32 %v2060, 4294901760
    %2062 = vmatprep.subr.mxu0 %v2061
    %v2063 = vand.u32 %v1646, 4294901760
    %v2064 = vsub.f32 %v1646, %v2063
    %v2065 = vand.u32 %v2064, 4294901760
    %v2066 = vsub.f32 %v2064, %v2065
    %v2067 = vand.u32 %v2066, 4294901760
    %2068 = vmatpush2.msra.mxu0 %v2067
    %v2069 = vand.u32 %v1645, 4294901760
    %v2070 = vsub.f32 %v1645, %v2069
    %v2071 = vand.u32 %v2070, 4294901760
    %v2072 = vsub.f32 %v2070, %v2071
    %v2073 = vand.u32 %v2072, 4294901760
    %2074 = vmatprep.subr.mxu0 %v2073
    %v2075 = vand.u32 %v1644, 4294901760
    %v2076 = vsub.f32 %v1644, %v2075
    %v2077 = vand.u32 %v2076, 4294901760
    %v2078 = vsub.f32 %v2076, %v2077
    %v2079 = vand.u32 %v2078, 4294901760
    %2080 = vmatpush2.msra.mxu0 %v2079
    %v2081 = vand.u32 %v1643, 4294901760
    %v2082 = vsub.f32 %v1643, %v2081
    %v2083 = vand.u32 %v2082, 4294901760
    %v2084 = vsub.f32 %v2082, %v2083
    %v2085 = vand.u32 %v2084, 4294901760
    %2086 = vmatprep.subr.mxu0 %v2085
    %v2087 = vand.u32 %v1642, 4294901760
    %v2088 = vsub.f32 %v1642, %v2087
    %v2089 = vand.u32 %v2088, 4294901760
    %v2090 = vsub.f32 %v2088, %v2089
    %v2091 = vand.u32 %v2090, 4294901760
    %2092 = vmatpush2.msra.mxu0 %v2091
    %v2093 = vand.u32 %v1641, 4294901760
    %v2094 = vsub.f32 %v1641, %v2093
    %v2095 = vand.u32 %v2094, 4294901760
    %v2096 = vsub.f32 %v2094, %v2095
    %v2097 = vand.u32 %v2096, 4294901760
    %2098 = vmatprep.subr.mxu0 %v2097
    %v2099 = vand.u32 %v1640, 4294901760
    %v2100 = vsub.f32 %v1640, %v2099
    %v2101 = vand.u32 %v2100, 4294901760
    %v2102 = vsub.f32 %v2100, %v2101
    %v2103 = vand.u32 %v2102, 4294901760
    %2104 = vmatpush2.msra.mxu0 %v2103
    %v2105 = vand.u32 %v1670, 4294901760
    %2106 = vmatprep.mubr.f32.mxu0 %v2105
    %v2107 = vand.u32 %v1606, 4294901760
    %2108 = vmatmul.mubr.f32.gmra.mxu0 %v2107
    %v2109 = vpop.f32.mrf.mxu0
    %v2110 = vadd.f32 %v1797, %v2109
    %v2111 = vpop.f32.mrf.mxu0
    %v2112 = vadd.f32 %v1799, %v2111
    %2113 = vdwg.mxu0
    %v2114 = vand.u32 %v1639, 4294901760
    %v2115 = vsub.f32 %v1639, %v2114
    %2116 = vmatprep.subr.mxu0 %v2115
    %v2117 = vand.u32 %v1638, 4294901760
    %v2118 = vsub.f32 %v1638, %v2117
    %2119 = vmatpush1.msra.mxu0 %v2118
    %v2120 = vand.u32 %v1637, 4294901760
    %v2121 = vsub.f32 %v1637, %v2120
    %2122 = vmatprep.subr.mxu0 %v2121
    %v2123 = vand.u32 %v1636, 4294901760
    %v2124 = vsub.f32 %v1636, %v2123
    %2125 = vmatpush1.msra.mxu0 %v2124
    %v2126 = vand.u32 %v1635, 4294901760
    %v2127 = vsub.f32 %v1635, %v2126
    %2128 = vmatprep.subr.mxu0 %v2127
    %v2129 = vand.u32 %v1634, 4294901760
    %v2130 = vsub.f32 %v1634, %v2129
    %2131 = vmatpush1.msra.mxu0 %v2130
    %v2132 = vand.u32 %v1633, 4294901760
    %v2133 = vsub.f32 %v1633, %v2132
    %2134 = vmatprep.subr.mxu0 %v2133
    %v2135 = vand.u32 %v1632, 4294901760
    %v2136 = vsub.f32 %v1632, %v2135
    %2137 = vmatpush1.msra.mxu0 %v2136
    %v2138 = vand.u32 %v1631, 4294901760
    %v2139 = vsub.f32 %v1631, %v2138
    %2140 = vmatprep.subr.mxu0 %v2139
    %v2141 = vand.u32 %v1630, 4294901760
    %v2142 = vsub.f32 %v1630, %v2141
    %2143 = vmatpush1.msra.mxu0 %v2142
    %v2144 = vand.u32 %v1629, 4294901760
    %v2145 = vsub.f32 %v1629, %v2144
    %2146 = vmatprep.subr.mxu0 %v2145
    %v2147 = vand.u32 %v1628, 4294901760
    %v2148 = vsub.f32 %v1628, %v2147
    %2149 = vmatpush1.msra.mxu0 %v2148
    %v2150 = vand.u32 %v1627, 4294901760
    %v2151 = vsub.f32 %v1627, %v2150
    %2152 = vmatprep.subr.mxu0 %v2151
    %v2153 = vand.u32 %v1626, 4294901760
    %v2154 = vsub.f32 %v1626, %v2153
    %2155 = vmatpush1.msra.mxu0 %v2154
    %v2156 = vand.u32 %v1625, 4294901760
    %v2157 = vsub.f32 %v1625, %v2156
    %2158 = vmatprep.subr.mxu0 %v2157
    %v2159 = vand.u32 %v1624, 4294901760
    %v2160 = vsub.f32 %v1624, %v2159
    %2161 = vmatpush1.msra.mxu0 %v2160
    %v2162 = vand.u32 %v1623, 4294901760
    %v2163 = vsub.f32 %v1623, %v2162
    %2164 = vmatprep.subr.mxu0 %v2163
    %v2165 = vand.u32 %v1622, 4294901760
    %v2166 = vsub.f32 %v1622, %v2165
    %2167 = vmatpush1.msra.mxu0 %v2166
    %v2168 = vand.u32 %v1621, 4294901760
    %v2169 = vsub.f32 %v1621, %v2168
    %2170 = vmatprep.subr.mxu0 %v2169
    %v2171 = vand.u32 %v1620, 4294901760
    %v2172 = vsub.f32 %v1620, %v2171
    %2173 = vmatpush1.msra.mxu0 %v2172
    %v2174 = vand.u32 %v1619, 4294901760
    %v2175 = vsub.f32 %v1619, %v2174
    %2176 = vmatprep.subr.mxu0 %v2175
    %v2177 = vand.u32 %v1618, 4294901760
    %v2178 = vsub.f32 %v1618, %v2177
    %2179 = vmatpush1.msra.mxu0 %v2178
    %v2180 = vand.u32 %v1617, 4294901760
    %v2181 = vsub.f32 %v1617, %v2180
    %2182 = vmatprep.subr.mxu0 %v2181
    %v2183 = vand.u32 %v1616, 4294901760
    %v2184 = vsub.f32 %v1616, %v2183
    %2185 = vmatpush1.msra.mxu0 %v2184
    %v2186 = vand.u32 %v1615, 4294901760
    %v2187 = vsub.f32 %v1615, %v2186
    %2188 = vmatprep.subr.mxu0 %v2187
    %v2189 = vand.u32 %v1614, 4294901760
    %v2190 = vsub.f32 %v1614, %v2189
    %2191 = vmatpush1.msra.mxu0 %v2190
    %v2192 = vand.u32 %v1613, 4294901760
    %v2193 = vsub.f32 %v1613, %v2192
    %2194 = vmatprep.subr.mxu0 %v2193
    %v2195 = vand.u32 %v1612, 4294901760
    %v2196 = vsub.f32 %v1612, %v2195
    %2197 = vmatpush1.msra.mxu0 %v2196
    %v2198 = vand.u32 %v1611, 4294901760
    %v2199 = vsub.f32 %v1611, %v2198
    %2200 = vmatprep.subr.mxu0 %v2199
    %v2201 = vand.u32 %v1610, 4294901760
    %v2202 = vsub.f32 %v1610, %v2201
    %2203 = vmatpush1.msra.mxu0 %v2202
    %v2204 = vand.u32 %v1609, 4294901760
    %v2205 = vsub.f32 %v1609, %v2204
    %2206 = vmatprep.subr.mxu0 %v2205
    %v2207 = vand.u32 %v1608, 4294901760
    %v2208 = vsub.f32 %v1608, %v2207
    %2209 = vmatpush1.msra.mxu0 %v2208
    %2210 = vmatprep.subr.mxu0 0.0
    %2211 = vmatpush2.msra.mxu0 0.0
    %2212 = vmatprep.subr.mxu0 0.0
    %2213 = vmatpush2.msra.mxu0 0.0
    %2214 = vmatprep.subr.mxu0 0.0
    %2215 = vmatpush2.msra.mxu0 0.0
    %2216 = vmatprep.subr.mxu0 0.0
    %2217 = vmatpush2.msra.mxu0 0.0
    %2218 = vmatprep.subr.mxu0 0.0
    %2219 = vmatpush2.msra.mxu0 0.0
    %2220 = vmatprep.subr.mxu0 0.0
    %2221 = vmatpush2.msra.mxu0 0.0
    %2222 = vmatprep.subr.mxu0 0.0
    %2223 = vmatpush2.msra.mxu0 0.0
    %2224 = vmatprep.subr.mxu0 0.0
    %2225 = vmatpush2.msra.mxu0 0.0
    %v2226 = vand.u32 %v1655, 4294901760
    %v2227 = vsub.f32 %v1655, %v2226
    %2228 = vmatprep.subr.mxu0 %v2227
    %v2229 = vand.u32 %v1654, 4294901760
    %v2230 = vsub.f32 %v1654, %v2229
    %2231 = vmatpush2.msra.mxu0 %v2230
    %v2232 = vand.u32 %v1653, 4294901760
    %v2233 = vsub.f32 %v1653, %v2232
    %2234 = vmatprep.subr.mxu0 %v2233
    %v2235 = vand.u32 %v1652, 4294901760
    %v2236 = vsub.f32 %v1652, %v2235
    %2237 = vmatpush2.msra.mxu0 %v2236
    %v2238 = vand.u32 %v1651, 4294901760
    %v2239 = vsub.f32 %v1651, %v2238
    %2240 = vmatprep.subr.mxu0 %v2239
    %v2241 = vand.u32 %v1650, 4294901760
    %v2242 = vsub.f32 %v1650, %v2241
    %2243 = vmatpush2.msra.mxu0 %v2242
    %v2244 = vand.u32 %v1649, 4294901760
    %v2245 = vsub.f32 %v1649, %v2244
    %2246 = vmatprep.subr.mxu0 %v2245
    %v2247 = vand.u32 %v1648, 4294901760
    %v2248 = vsub.f32 %v1648, %v2247
    %2249 = vmatpush2.msra.mxu0 %v2248
    %v2250 = vand.u32 %v1647, 4294901760
    %v2251 = vsub.f32 %v1647, %v2250
    %2252 = vmatprep.subr.mxu0 %v2251
    %v2253 = vand.u32 %v1646, 4294901760
    %v2254 = vsub.f32 %v1646, %v2253
    %2255 = vmatpush2.msra.mxu0 %v2254
    %v2256 = vand.u32 %v1645, 4294901760
    %v2257 = vsub.f32 %v1645, %v2256
    %2258 = vmatprep.subr.mxu0 %v2257
    %v2259 = vand.u32 %v1644, 4294901760
    %v2260 = vsub.f32 %v1644, %v2259
    %2261 = vmatpush2.msra.mxu0 %v2260
    %v2262 = vand.u32 %v1643, 4294901760
    %v2263 = vsub.f32 %v1643, %v2262
    %2264 = vmatprep.subr.mxu0 %v2263
    %v2265 = vand.u32 %v1642, 4294901760
    %v2266 = vsub.f32 %v1642, %v2265
    %2267 = vmatpush2.msra.mxu0 %v2266
    %v2268 = vand.u32 %v1641, 4294901760
    %v2269 = vsub.f32 %v1641, %v2268
    %2270 = vmatprep.subr.mxu0 %v2269
    %v2271 = vand.u32 %v1640, 4294901760
    %v2272 = vsub.f32 %v1640, %v2271
    %2273 = vmatpush2.msra.mxu0 %v2272
    %v2274 = vand.u32 %v1670, 4294901760
    %v2275 = vsub.f32 %v1670, %v2274
    %2276 = vmatprep.mubr.f32.mxu0 %v2275
    %v2277 = vand.u32 %v1606, 4294901760
    %v2278 = vsub.f32 %v1606, %v2277
    %2279 = vmatmul.mubr.f32.gmra.mxu0 %v2278
    %v2280 = vpop.f32.mrf.mxu0
    %v2281 = vadd.f32 %v2110, %v2280
    %v2282 = vpop.f32.mrf.mxu0
    %v2283 = vadd.f32 %v2112, %v2282
    %2284 = vdwg.mxu0
    %v2285 = vand.u32 %v1639, 4294901760
    %2286 = vmatprep.subr.mxu0 %v2285
    %v2287 = vand.u32 %v1638, 4294901760
    %2288 = vmatpush1.msra.mxu0 %v2287
    %v2289 = vand.u32 %v1637, 4294901760
    %2290 = vmatprep.subr.mxu0 %v2289
    %v2291 = vand.u32 %v1636, 4294901760
    %2292 = vmatpush1.msra.mxu0 %v2291
    %v2293 = vand.u32 %v1635, 4294901760
    %2294 = vmatprep.subr.mxu0 %v2293
    %v2295 = vand.u32 %v1634, 4294901760
    %2296 = vmatpush1.msra.mxu0 %v2295
    %v2297 = vand.u32 %v1633, 4294901760
    %2298 = vmatprep.subr.mxu0 %v2297
    %v2299 = vand.u32 %v1632, 4294901760
    %2300 = vmatpush1.msra.mxu0 %v2299
    %v2301 = vand.u32 %v1631, 4294901760
    %2302 = vmatprep.subr.mxu0 %v2301
    %v2303 = vand.u32 %v1630, 4294901760
    %2304 = vmatpush1.msra.mxu0 %v2303
    %v2305 = vand.u32 %v1629, 4294901760
    %2306 = vmatprep.subr.mxu0 %v2305
    %v2307 = vand.u32 %v1628, 4294901760
    %2308 = vmatpush1.msra.mxu0 %v2307
    %v2309 = vand.u32 %v1627, 4294901760
    %2310 = vmatprep.subr.mxu0 %v2309
    %v2311 = vand.u32 %v1626, 4294901760
    %2312 = vmatpush1.msra.mxu0 %v2311
    %v2313 = vand.u32 %v1625, 4294901760
    %2314 = vmatprep.subr.mxu0 %v2313
    %v2315 = vand.u32 %v1624, 4294901760
    %2316 = vmatpush1.msra.mxu0 %v2315
    %v2317 = vand.u32 %v1623, 4294901760
    %2318 = vmatprep.subr.mxu0 %v2317
    %v2319 = vand.u32 %v1622, 4294901760
    %2320 = vmatpush1.msra.mxu0 %v2319
    %v2321 = vand.u32 %v1621, 4294901760
    %2322 = vmatprep.subr.mxu0 %v2321
    %v2323 = vand.u32 %v1620, 4294901760
    %2324 = vmatpush1.msra.mxu0 %v2323
    %v2325 = vand.u32 %v1619, 4294901760
    %2326 = vmatprep.subr.mxu0 %v2325
    %v2327 = vand.u32 %v1618, 4294901760
    %2328 = vmatpush1.msra.mxu0 %v2327
    %v2329 = vand.u32 %v1617, 4294901760
    %2330 = vmatprep.subr.mxu0 %v2329
    %v2331 = vand.u32 %v1616, 4294901760
    %2332 = vmatpush1.msra.mxu0 %v2331
    %v2333 = vand.u32 %v1615, 4294901760
    %2334 = vmatprep.subr.mxu0 %v2333
    %v2335 = vand.u32 %v1614, 4294901760
    %2336 = vmatpush1.msra.mxu0 %v2335
    %v2337 = vand.u32 %v1613, 4294901760
    %2338 = vmatprep.subr.mxu0 %v2337
    %v2339 = vand.u32 %v1612, 4294901760
    %2340 = vmatpush1.msra.mxu0 %v2339
    %v2341 = vand.u32 %v1611, 4294901760
    %2342 = vmatprep.subr.mxu0 %v2341
    %v2343 = vand.u32 %v1610, 4294901760
    %2344 = vmatpush1.msra.mxu0 %v2343
    %v2345 = vand.u32 %v1609, 4294901760
    %2346 = vmatprep.subr.mxu0 %v2345
    %v2347 = vand.u32 %v1608, 4294901760
    %2348 = vmatpush1.msra.mxu0 %v2347
    %2349 = vmatprep.subr.mxu0 0.0
    %2350 = vmatpush2.msra.mxu0 0.0
    %2351 = vmatprep.subr.mxu0 0.0
    %2352 = vmatpush2.msra.mxu0 0.0
    %2353 = vmatprep.subr.mxu0 0.0
    %2354 = vmatpush2.msra.mxu0 0.0
    %2355 = vmatprep.subr.mxu0 0.0
    %2356 = vmatpush2.msra.mxu0 0.0
    %2357 = vmatprep.subr.mxu0 0.0
    %2358 = vmatpush2.msra.mxu0 0.0
    %2359 = vmatprep.subr.mxu0 0.0
    %2360 = vmatpush2.msra.mxu0 0.0
    %2361 = vmatprep.subr.mxu0 0.0
    %2362 = vmatpush2.msra.mxu0 0.0
    %2363 = vmatprep.subr.mxu0 0.0
    %2364 = vmatpush2.msra.mxu0 0.0
    %v2365 = vand.u32 %v1655, 4294901760
    %2366 = vmatprep.subr.mxu0 %v2365
    %v2367 = vand.u32 %v1654, 4294901760
    %2368 = vmatpush2.msra.mxu0 %v2367
    %v2369 = vand.u32 %v1653, 4294901760
    %2370 = vmatprep.subr.mxu0 %v2369
    %v2371 = vand.u32 %v1652, 4294901760
    %2372 = vmatpush2.msra.mxu0 %v2371
    %v2373 = vand.u32 %v1651, 4294901760
    %2374 = vmatprep.subr.mxu0 %v2373
    %v2375 = vand.u32 %v1650, 4294901760
    %2376 = vmatpush2.msra.mxu0 %v2375
    %v2377 = vand.u32 %v1649, 4294901760
    %2378 = vmatprep.subr.mxu0 %v2377
    %v2379 = vand.u32 %v1648, 4294901760
    %2380 = vmatpush2.msra.mxu0 %v2379
    %v2381 = vand.u32 %v1647, 4294901760
    %2382 = vmatprep.subr.mxu0 %v2381
    %v2383 = vand.u32 %v1646, 4294901760
    %2384 = vmatpush2.msra.mxu0 %v2383
    %v2385 = vand.u32 %v1645, 4294901760
    %2386 = vmatprep.subr.mxu0 %v2385
    %v2387 = vand.u32 %v1644, 4294901760
    %2388 = vmatpush2.msra.mxu0 %v2387
    %v2389 = vand.u32 %v1643, 4294901760
    %2390 = vmatprep.subr.mxu0 %v2389
    %v2391 = vand.u32 %v1642, 4294901760
    %2392 = vmatpush2.msra.mxu0 %v2391
    %v2393 = vand.u32 %v1641, 4294901760
    %2394 = vmatprep.subr.mxu0 %v2393
    %v2395 = vand.u32 %v1640, 4294901760
    %2396 = vmatpush2.msra.mxu0 %v2395
    %v2397 = vand.u32 %v1670, 4294901760
    %v2398 = vsub.f32 %v1670, %v2397
    %v2399 = vand.u32 %v2398, 4294901760
    %2400 = vmatprep.mubr.f32.mxu0 %v2399
    %v2401 = vand.u32 %v1606, 4294901760
    %v2402 = vsub.f32 %v1606, %v2401
    %v2403 = vand.u32 %v2402, 4294901760
    %2404 = vmatmul.mubr.f32.gmra.mxu0 %v2403
    %v2405 = vpop.f32.mrf.mxu0
    %v2406 = vadd.f32 %v2281, %v2405
    %v2407 = vpop.f32.mrf.mxu0
    %v2408 = vadd.f32 %v2283, %v2407
    %2409 = vdwg.mxu0
    %v2410 = vand.u32 %v1639, 4294901760
    %v2411 = vsub.f32 %v1639, %v2410
    %v2412 = vand.u32 %v2411, 4294901760
    %2413 = vmatprep.subr.mxu0 %v2412
    %v2414 = vand.u32 %v1638, 4294901760
    %v2415 = vsub.f32 %v1638, %v2414
    %v2416 = vand.u32 %v2415, 4294901760
    %2417 = vmatpush1.msra.mxu0 %v2416
    %v2418 = vand.u32 %v1637, 4294901760
    %v2419 = vsub.f32 %v1637, %v2418
    %v2420 = vand.u32 %v2419, 4294901760
    %2421 = vmatprep.subr.mxu0 %v2420
    %v2422 = vand.u32 %v1636, 4294901760
    %v2423 = vsub.f32 %v1636, %v2422
    %v2424 = vand.u32 %v2423, 4294901760
    %2425 = vmatpush1.msra.mxu0 %v2424
    %v2426 = vand.u32 %v1635, 4294901760
    %v2427 = vsub.f32 %v1635, %v2426
    %v2428 = vand.u32 %v2427, 4294901760
    %2429 = vmatprep.subr.mxu0 %v2428
    %v2430 = vand.u32 %v1634, 4294901760
    %v2431 = vsub.f32 %v1634, %v2430
    %v2432 = vand.u32 %v2431, 4294901760
    %2433 = vmatpush1.msra.mxu0 %v2432
    %v2434 = vand.u32 %v1633, 4294901760
    %v2435 = vsub.f32 %v1633, %v2434
    %v2436 = vand.u32 %v2435, 4294901760
    %2437 = vmatprep.subr.mxu0 %v2436
    %v2438 = vand.u32 %v1632, 4294901760
    %v2439 = vsub.f32 %v1632, %v2438
    %v2440 = vand.u32 %v2439, 4294901760
    %2441 = vmatpush1.msra.mxu0 %v2440
    %v2442 = vand.u32 %v1631, 4294901760
    %v2443 = vsub.f32 %v1631, %v2442
    %v2444 = vand.u32 %v2443, 4294901760
    %2445 = vmatprep.subr.mxu0 %v2444
    %v2446 = vand.u32 %v1630, 4294901760
    %v2447 = vsub.f32 %v1630, %v2446
    %v2448 = vand.u32 %v2447, 4294901760
    %2449 = vmatpush1.msra.mxu0 %v2448
    %v2450 = vand.u32 %v1629, 4294901760
    %v2451 = vsub.f32 %v1629, %v2450
    %v2452 = vand.u32 %v2451, 4294901760
    %2453 = vmatprep.subr.mxu0 %v2452
    %v2454 = vand.u32 %v1628, 4294901760
    %v2455 = vsub.f32 %v1628, %v2454
    %v2456 = vand.u32 %v2455, 4294901760
    %2457 = vmatpush1.msra.mxu0 %v2456
    %v2458 = vand.u32 %v1627, 4294901760
    %v2459 = vsub.f32 %v1627, %v2458
    %v2460 = vand.u32 %v2459, 4294901760
    %2461 = vmatprep.subr.mxu0 %v2460
    %v2462 = vand.u32 %v1626, 4294901760
    %v2463 = vsub.f32 %v1626, %v2462
    %v2464 = vand.u32 %v2463, 4294901760
    %2465 = vmatpush1.msra.mxu0 %v2464
    %v2466 = vand.u32 %v1625, 4294901760
    %v2467 = vsub.f32 %v1625, %v2466
    %v2468 = vand.u32 %v2467, 4294901760
    %2469 = vmatprep.subr.mxu0 %v2468
    %v2470 = vand.u32 %v1624, 4294901760
    %v2471 = vsub.f32 %v1624, %v2470
    %v2472 = vand.u32 %v2471, 4294901760
    %2473 = vmatpush1.msra.mxu0 %v2472
    %v2474 = vand.u32 %v1623, 4294901760
    %v2475 = vsub.f32 %v1623, %v2474
    %v2476 = vand.u32 %v2475, 4294901760
    %2477 = vmatprep.subr.mxu0 %v2476
    %v2478 = vand.u32 %v1622, 4294901760
    %v2479 = vsub.f32 %v1622, %v2478
    %v2480 = vand.u32 %v2479, 4294901760
    %2481 = vmatpush1.msra.mxu0 %v2480
    %v2482 = vand.u32 %v1621, 4294901760
    %v2483 = vsub.f32 %v1621, %v2482
    %v2484 = vand.u32 %v2483, 4294901760
    %2485 = vmatprep.subr.mxu0 %v2484
    %v2486 = vand.u32 %v1620, 4294901760
    %v2487 = vsub.f32 %v1620, %v2486
    %v2488 = vand.u32 %v2487, 4294901760
    %2489 = vmatpush1.msra.mxu0 %v2488
    %v2490 = vand.u32 %v1619, 4294901760
    %v2491 = vsub.f32 %v1619, %v2490
    %v2492 = vand.u32 %v2491, 4294901760
    %2493 = vmatprep.subr.mxu0 %v2492
    %v2494 = vand.u32 %v1618, 4294901760
    %v2495 = vsub.f32 %v1618, %v2494
    %v2496 = vand.u32 %v2495, 4294901760
    %2497 = vmatpush1.msra.mxu0 %v2496
    %v2498 = vand.u32 %v1617, 4294901760
    %v2499 = vsub.f32 %v1617, %v2498
    %v2500 = vand.u32 %v2499, 4294901760
    %2501 = vmatprep.subr.mxu0 %v2500
    %v2502 = vand.u32 %v1616, 4294901760
    %v2503 = vsub.f32 %v1616, %v2502
    %v2504 = vand.u32 %v2503, 4294901760
    %2505 = vmatpush1.msra.mxu0 %v2504
    %v2506 = vand.u32 %v1615, 4294901760
    %v2507 = vsub.f32 %v1615, %v2506
    %v2508 = vand.u32 %v2507, 4294901760
    %2509 = vmatprep.subr.mxu0 %v2508
    %v2510 = vand.u32 %v1614, 4294901760
    %v2511 = vsub.f32 %v1614, %v2510
    %v2512 = vand.u32 %v2511, 4294901760
    %2513 = vmatpush1.msra.mxu0 %v2512
    %v2514 = vand.u32 %v1613, 4294901760
    %v2515 = vsub.f32 %v1613, %v2514
    %v2516 = vand.u32 %v2515, 4294901760
    %2517 = vmatprep.subr.mxu0 %v2516
    %v2518 = vand.u32 %v1612, 4294901760
    %v2519 = vsub.f32 %v1612, %v2518
    %v2520 = vand.u32 %v2519, 4294901760
    %2521 = vmatpush1.msra.mxu0 %v2520
    %v2522 = vand.u32 %v1611, 4294901760
    %v2523 = vsub.f32 %v1611, %v2522
    %v2524 = vand.u32 %v2523, 4294901760
    %2525 = vmatprep.subr.mxu0 %v2524
    %v2526 = vand.u32 %v1610, 4294901760
    %v2527 = vsub.f32 %v1610, %v2526
    %v2528 = vand.u32 %v2527, 4294901760
    %2529 = vmatpush1.msra.mxu0 %v2528
    %v2530 = vand.u32 %v1609, 4294901760
    %v2531 = vsub.f32 %v1609, %v2530
    %v2532 = vand.u32 %v2531, 4294901760
    %2533 = vmatprep.subr.mxu0 %v2532
    %v2534 = vand.u32 %v1608, 4294901760
    %v2535 = vsub.f32 %v1608, %v2534
    %v2536 = vand.u32 %v2535, 4294901760
    %2537 = vmatpush1.msra.mxu0 %v2536
    %2538 = vmatprep.subr.mxu0 0.0
    %2539 = vmatpush2.msra.mxu0 0.0
    %2540 = vmatprep.subr.mxu0 0.0
    %2541 = vmatpush2.msra.mxu0 0.0
    %2542 = vmatprep.subr.mxu0 0.0
    %2543 = vmatpush2.msra.mxu0 0.0
    %2544 = vmatprep.subr.mxu0 0.0
    %2545 = vmatpush2.msra.mxu0 0.0
    %2546 = vmatprep.subr.mxu0 0.0
    %2547 = vmatpush2.msra.mxu0 0.0
    %2548 = vmatprep.subr.mxu0 0.0
    %2549 = vmatpush2.msra.mxu0 0.0
    %2550 = vmatprep.subr.mxu0 0.0
    %2551 = vmatpush2.msra.mxu0 0.0
    %2552 = vmatprep.subr.mxu0 0.0
    %2553 = vmatpush2.msra.mxu0 0.0
    %v2554 = vand.u32 %v1655, 4294901760
    %v2555 = vsub.f32 %v1655, %v2554
    %v2556 = vand.u32 %v2555, 4294901760
    %2557 = vmatprep.subr.mxu0 %v2556
    %v2558 = vand.u32 %v1654, 4294901760
    %v2559 = vsub.f32 %v1654, %v2558
    %v2560 = vand.u32 %v2559, 4294901760
    %2561 = vmatpush2.msra.mxu0 %v2560
    %v2562 = vand.u32 %v1653, 4294901760
    %v2563 = vsub.f32 %v1653, %v2562
    %v2564 = vand.u32 %v2563, 4294901760
    %2565 = vmatprep.subr.mxu0 %v2564
    %v2566 = vand.u32 %v1652, 4294901760
    %v2567 = vsub.f32 %v1652, %v2566
    %v2568 = vand.u32 %v2567, 4294901760
    %2569 = vmatpush2.msra.mxu0 %v2568
    %v2570 = vand.u32 %v1651, 4294901760
    %v2571 = vsub.f32 %v1651, %v2570
    %v2572 = vand.u32 %v2571, 4294901760
    %2573 = vmatprep.subr.mxu0 %v2572
    %v2574 = vand.u32 %v1650, 4294901760
    %v2575 = vsub.f32 %v1650, %v2574
    %v2576 = vand.u32 %v2575, 4294901760
    %2577 = vmatpush2.msra.mxu0 %v2576
    %v2578 = vand.u32 %v1649, 4294901760
    %v2579 = vsub.f32 %v1649, %v2578
    %v2580 = vand.u32 %v2579, 4294901760
    %2581 = vmatprep.subr.mxu0 %v2580
    %v2582 = vand.u32 %v1648, 4294901760
    %v2583 = vsub.f32 %v1648, %v2582
    %v2584 = vand.u32 %v2583, 4294901760
    %2585 = vmatpush2.msra.mxu0 %v2584
    %v2586 = vand.u32 %v1647, 4294901760
    %v2587 = vsub.f32 %v1647, %v2586
    %v2588 = vand.u32 %v2587, 4294901760
    %2589 = vmatprep.subr.mxu0 %v2588
    %v2590 = vand.u32 %v1646, 4294901760
    %v2591 = vsub.f32 %v1646, %v2590
    %v2592 = vand.u32 %v2591, 4294901760
    %2593 = vmatpush2.msra.mxu0 %v2592
    %v2594 = vand.u32 %v1645, 4294901760
    %v2595 = vsub.f32 %v1645, %v2594
    %v2596 = vand.u32 %v2595, 4294901760
    %2597 = vmatprep.subr.mxu0 %v2596
    %v2598 = vand.u32 %v1644, 4294901760
    %v2599 = vsub.f32 %v1644, %v2598
    %v2600 = vand.u32 %v2599, 4294901760
    %2601 = vmatpush2.msra.mxu0 %v2600
    %v2602 = vand.u32 %v1643, 4294901760
    %v2603 = vsub.f32 %v1643, %v2602
    %v2604 = vand.u32 %v2603, 4294901760
    %2605 = vmatprep.subr.mxu0 %v2604
    %v2606 = vand.u32 %v1642, 4294901760
    %v2607 = vsub.f32 %v1642, %v2606
    %v2608 = vand.u32 %v2607, 4294901760
    %2609 = vmatpush2.msra.mxu0 %v2608
    %v2610 = vand.u32 %v1641, 4294901760
    %v2611 = vsub.f32 %v1641, %v2610
    %v2612 = vand.u32 %v2611, 4294901760
    %2613 = vmatprep.subr.mxu0 %v2612
    %v2614 = vand.u32 %v1640, 4294901760
    %v2615 = vsub.f32 %v1640, %v2614
    %v2616 = vand.u32 %v2615, 4294901760
    %2617 = vmatpush2.msra.mxu0 %v2616
    %v2618 = vand.u32 %v1670, 4294901760
    %2619 = vmatprep.mubr.f32.mxu0 %v2618
    %v2620 = vand.u32 %v1606, 4294901760
    %2621 = vmatmul.mubr.f32.gmra.mxu0 %v2620
    %v2622 = vpop.f32.mrf.mxu0
    %v2623 = vadd.f32 %v2406, %v2622
    %v2624 = vpop.f32.mrf.mxu0
    %v2625 = vadd.f32 %v2408, %v2624
    %2626 = vdwg.mxu0
    %v2627 = vand.u32 %v1639, 4294901760
    %2628 = vmatprep.subr.mxu0 %v2627
    %v2629 = vand.u32 %v1638, 4294901760
    %2630 = vmatpush1.msra.mxu0 %v2629
    %v2631 = vand.u32 %v1637, 4294901760
    %2632 = vmatprep.subr.mxu0 %v2631
    %v2633 = vand.u32 %v1636, 4294901760
    %2634 = vmatpush1.msra.mxu0 %v2633
    %v2635 = vand.u32 %v1635, 4294901760
    %2636 = vmatprep.subr.mxu0 %v2635
    %v2637 = vand.u32 %v1634, 4294901760
    %2638 = vmatpush1.msra.mxu0 %v2637
    %v2639 = vand.u32 %v1633, 4294901760
    %2640 = vmatprep.subr.mxu0 %v2639
    %v2641 = vand.u32 %v1632, 4294901760
    %2642 = vmatpush1.msra.mxu0 %v2641
    %v2643 = vand.u32 %v1631, 4294901760
    %2644 = vmatprep.subr.mxu0 %v2643
    %v2645 = vand.u32 %v1630, 4294901760
    %2646 = vmatpush1.msra.mxu0 %v2645
    %v2647 = vand.u32 %v1629, 4294901760
    %2648 = vmatprep.subr.mxu0 %v2647
    %v2649 = vand.u32 %v1628, 4294901760
    %2650 = vmatpush1.msra.mxu0 %v2649
    %v2651 = vand.u32 %v1627, 4294901760
    %2652 = vmatprep.subr.mxu0 %v2651
    %v2653 = vand.u32 %v1626, 4294901760
    %2654 = vmatpush1.msra.mxu0 %v2653
    %v2655 = vand.u32 %v1625, 4294901760
    %2656 = vmatprep.subr.mxu0 %v2655
    %v2657 = vand.u32 %v1624, 4294901760
    %2658 = vmatpush1.msra.mxu0 %v2657
    %v2659 = vand.u32 %v1623, 4294901760
    %2660 = vmatprep.subr.mxu0 %v2659
    %v2661 = vand.u32 %v1622, 4294901760
    %2662 = vmatpush1.msra.mxu0 %v2661
    %v2663 = vand.u32 %v1621, 4294901760
    %2664 = vmatprep.subr.mxu0 %v2663
    %v2665 = vand.u32 %v1620, 4294901760
    %2666 = vmatpush1.msra.mxu0 %v2665
    %v2667 = vand.u32 %v1619, 4294901760
    %2668 = vmatprep.subr.mxu0 %v2667
    %v2669 = vand.u32 %v1618, 4294901760
    %2670 = vmatpush1.msra.mxu0 %v2669
    %v2671 = vand.u32 %v1617, 4294901760
    %2672 = vmatprep.subr.mxu0 %v2671
    %v2673 = vand.u32 %v1616, 4294901760
    %2674 = vmatpush1.msra.mxu0 %v2673
    %v2675 = vand.u32 %v1615, 4294901760
    %2676 = vmatprep.subr.mxu0 %v2675
    %v2677 = vand.u32 %v1614, 4294901760
    %2678 = vmatpush1.msra.mxu0 %v2677
    %v2679 = vand.u32 %v1613, 4294901760
    %2680 = vmatprep.subr.mxu0 %v2679
    %v2681 = vand.u32 %v1612, 4294901760
    %2682 = vmatpush1.msra.mxu0 %v2681
    %v2683 = vand.u32 %v1611, 4294901760
    %2684 = vmatprep.subr.mxu0 %v2683
    %v2685 = vand.u32 %v1610, 4294901760
    %2686 = vmatpush1.msra.mxu0 %v2685
    %v2687 = vand.u32 %v1609, 4294901760
    %2688 = vmatprep.subr.mxu0 %v2687
    %v2689 = vand.u32 %v1608, 4294901760
    %2690 = vmatpush1.msra.mxu0 %v2689
    %2691 = vmatprep.subr.mxu0 0.0
    %2692 = vmatpush2.msra.mxu0 0.0
    %2693 = vmatprep.subr.mxu0 0.0
    %2694 = vmatpush2.msra.mxu0 0.0
    %2695 = vmatprep.subr.mxu0 0.0
    %2696 = vmatpush2.msra.mxu0 0.0
    %2697 = vmatprep.subr.mxu0 0.0
    %2698 = vmatpush2.msra.mxu0 0.0
    %2699 = vmatprep.subr.mxu0 0.0
    %2700 = vmatpush2.msra.mxu0 0.0
    %2701 = vmatprep.subr.mxu0 0.0
    %2702 = vmatpush2.msra.mxu0 0.0
    %2703 = vmatprep.subr.mxu0 0.0
    %2704 = vmatpush2.msra.mxu0 0.0
    %2705 = vmatprep.subr.mxu0 0.0
    %2706 = vmatpush2.msra.mxu0 0.0
    %v2707 = vand.u32 %v1655, 4294901760
    %2708 = vmatprep.subr.mxu0 %v2707
    %v2709 = vand.u32 %v1654, 4294901760
    %2710 = vmatpush2.msra.mxu0 %v2709
    %v2711 = vand.u32 %v1653, 4294901760
    %2712 = vmatprep.subr.mxu0 %v2711
    %v2713 = vand.u32 %v1652, 4294901760
    %2714 = vmatpush2.msra.mxu0 %v2713
    %v2715 = vand.u32 %v1651, 4294901760
    %2716 = vmatprep.subr.mxu0 %v2715
    %v2717 = vand.u32 %v1650, 4294901760
    %2718 = vmatpush2.msra.mxu0 %v2717
    %v2719 = vand.u32 %v1649, 4294901760
    %2720 = vmatprep.subr.mxu0 %v2719
    %v2721 = vand.u32 %v1648, 4294901760
    %2722 = vmatpush2.msra.mxu0 %v2721
    %v2723 = vand.u32 %v1647, 4294901760
    %2724 = vmatprep.subr.mxu0 %v2723
    %v2725 = vand.u32 %v1646, 4294901760
    %2726 = vmatpush2.msra.mxu0 %v2725
    %v2727 = vand.u32 %v1645, 4294901760
    %2728 = vmatprep.subr.mxu0 %v2727
    %v2729 = vand.u32 %v1644, 4294901760
    %2730 = vmatpush2.msra.mxu0 %v2729
    %v2731 = vand.u32 %v1643, 4294901760
    %2732 = vmatprep.subr.mxu0 %v2731
    %v2733 = vand.u32 %v1642, 4294901760
    %2734 = vmatpush2.msra.mxu0 %v2733
    %v2735 = vand.u32 %v1641, 4294901760
    %2736 = vmatprep.subr.mxu0 %v2735
    %v2737 = vand.u32 %v1640, 4294901760
    %2738 = vmatpush2.msra.mxu0 %v2737
    %v2739 = vand.u32 %v1670, 4294901760
    %2740 = vmatprep.mubr.f32.mxu0 %v2739
    %v2741 = vand.u32 %v1606, 4294901760
    %2742 = vmatmul.mubr.f32.gmra.mxu0 %v2741
    %v2743 = vpop.f32.mrf.mxu0
    %v2744 = vadd.f32 %v2623, %v2743
    %v2745 = vpop.f32.mrf.mxu0
    %v2746 = vadd.f32 %v2625, %v2745
    %2747 = vdwg.mxu0
    %2748 = vst [vmem:[#allocation5] sm:$0xff] %v2744
    %2749 = vst [vmem:[#allocation5 + $0x8] sm:$0xff] %v2746
    // Predicated region
    $region34: #{tpu_custom_call.1} parent=1 // pred_check
      _
    $region35: #{tpu_custom_call.1} parent=1 // pred_check_branch
      %2751 = sbr.rel (0) target = $region37
    $region36: #{tpu_custom_call.1} parent=1 // pred_region
      %s2753 = ssub.s32 256, 256
      %2754 = vsyncadd [#allocation4], %s2753
      %s2756 = sshll.u32 [#allocation5], 4
      %s2757 = int_to_ptr.vmem [resolvable:$true] %s2756
      %2759 = dma.vmem_to_hbm [thread:$0]  %s2757, 256, %s7, [#allocation4]
    $region37: #{tpu_custom_call.1} parent=1 // pred_fallthru
      _
    // Predicated region
    $region38: #{tpu_custom_call.1} parent=1 // pred_check
      _
    $region39: #{tpu_custom_call.1} parent=1 // pred_check_branch
      %2761 = sbr.rel (0) target = $region41
    $region40: #{tpu_custom_call.1} parent=1 // pred_region
      %2762 = dma.done [#allocation4], 256
    $region41: #{tpu_custom_call.1} parent=1 // pred_fallthru
      _
    %2763 = vsyncpa [#allocation3], 1
    %2764 = vsyncpa [#allocation4], 1

</llo_original>
